<compile_context>
chip_gen: v7x
topology: tpu7x:2x2x1
jax: 0.10.0
libtpu: 0.0.40
codegen_flags: <defaults>
</compile_context>

<pallas_src>
import math
import jax
import jax.numpy as jnp
from jax.experimental import pallas as pl
from jax.experimental.pallas import tpu as pltpu


def _lstm_kernel(x_ref, w_ref, u_ref, b_ref, out_ref, h_out_ref, c_out_ref,
                 h_sc, c_sc):
    tb = pl.program_id(1)                 # time-block index (inner, sequential)
    nb, T, din = x_ref.shape              # (batch_block, time_block, input_sz)
    H = h_sc.shape[1]

    @pl.when(tb == 0)
    def _():
        # Reset carries at the start of each batch shard's time sweep.
        h_sc[...] = jnp.zeros_like(h_sc)
        c_sc[...] = jnp.zeros_like(c_sc)

    # --- Hoisted input projection: ONE MXU matmul per time block ------------
    # (nb*T, din) @ (din, 4H) + b  ->  (nb, T, 4H), f32 accumulation.
    x2d = x_ref[...].reshape(nb * T, din)
    gx = (
        jnp.dot(x2d, w_ref[...], preferred_element_type=jnp.float32)
        + b_ref[...]
    ).reshape(nb, T, 4 * H)

    h = h_sc[...]
    c = c_sc[...]

    # --- Statically-unrolled recurrence over the time block ------------------
    # Only h @ U (fused 4-gate MXU matmul) + elementwise gate math remains on
    # the serial critical path; sigmoid/tanh go to the EUP slot.
    for j in range(T):
        gates = gx[:, j, :] + jnp.dot(
            h.astype(u_ref.dtype), u_ref[...],
            preferred_element_type=jnp.float32,
        )
        i_t = jax.nn.sigmoid(gates[:, 0 * H:1 * H])
        f_t = jax.nn.sigmoid(gates[:, 1 * H:2 * H])
        g_t = jnp.tanh(gates[:, 2 * H:3 * H])
        o_t = jax.nn.sigmoid(gates[:, 3 * H:4 * H])
        c = f_t * c + i_t * g_t
        h = o_t * jnp.tanh(c)
        # Store into the block output buffer (VMEM); the HBM writeback is one
        # (T, nb, H) DMA per grid step.
        out_ref[j] = h.astype(out_ref.dtype)

    h_sc[...] = h
    c_sc[...] = c

    # Block index for these outputs is constant along the time axis, so only
    # the values from the final time block reach HBM.  Unconditional VMEM
    # stores are cheap and avoid any uninitialized-revisit corner case.
    h_out_ref[...] = h.astype(h_out_ref.dtype)
    c_out_ref[...] = c.astype(c_out_ref.dtype)


def _pick_time_block(seq, cap=16):
    """Largest time block that satisfies Mosaic's (8,128) BlockSpec rule:
    either the full sequence, or a multiple of 8 dividing seq."""
    if seq <= cap:
        return seq
    for d in range(min(seq, cap), 0, -1):
        if seq % d == 0 and d % 8 == 0:
            return d
    return seq  # fall back to a single block covering the whole sequence


def lstm_forward(x, w, u, b, *, time_block=None, batch_block=None,
                 matmul_dtype=jnp.float32):
    """x: (bs, seq, input_sz); w: (input_sz, 4H); u: (H, 4H); b: (4H,).

    Returns (lstm_output (seq, bs, H), (h_t (bs, H), c_t (bs, H))).
    On v6e/v7x, `matmul_dtype=jnp.bfloat16` halves weight/activation MXU
    traffic while keeping f32 accumulation and f32 h/c carries.
    """
    bs, seq, input_sz = x.shape
    H = u.shape[0]
    assert w.shape == (input_sz, 4 * H)
    assert u.shape == (H, 4 * H)
    assert b.shape == (4 * H,)

    T = time_block if time_block is not None else _pick_time_block(seq)
    BB = batch_block if batch_block is not None else bs
    assert seq % T == 0 and bs % BB == 0

    xk = x.astype(matmul_dtype)
    wk = w.astype(matmul_dtype)
    uk = u.astype(matmul_dtype)
    b2 = b.reshape(1, 4 * H).astype(jnp.float32)

    grid = (bs // BB, seq // T)  # (batch shards [parallel], time blocks [arbitrary])

    out, h_final, c_final = pl.pallas_call(
        _lstm_kernel,
        out_shape=(
            jax.ShapeDtypeStruct((seq, bs, H), jnp.float32),
            jax.ShapeDtypeStruct((bs, H), jnp.float32),
            jax.ShapeDtypeStruct((bs, H), jnp.float32),
        ),
        grid_spec=pltpu.PrefetchScalarGridSpec(
            num_scalar_prefetch=0,
            grid=grid,
            in_specs=[
                # x indexed directly in its native (bs, seq, input_sz) layout
                # (no host-side transpose).
                pl.BlockSpec((BB, T, input_sz), lambda bb, tb: (bb, tb, 0)),
                pl.BlockSpec((input_sz, 4 * H), lambda bb, tb: (0, 0)),
                pl.BlockSpec((H, 4 * H), lambda bb, tb: (0, 0)),
                pl.BlockSpec((1, 4 * H), lambda bb, tb: (0, 0)),
            ],
            out_specs=[
                pl.BlockSpec((T, BB, H), lambda bb, tb: (tb, bb, 0)),
                pl.BlockSpec((BB, H), lambda bb, tb: (bb, 0)),
                pl.BlockSpec((BB, H), lambda bb, tb: (bb, 0)),
            ],
            scratch_shapes=[
                pltpu.VMEM((BB, H), jnp.float32),  # h carry
                pltpu.VMEM((BB, H), jnp.float32),  # c carry
            ],
        ),
        compiler_params=pltpu.CompilerParams(
            # Batch shards are independent; the time recurrence is sequential.
            dimension_semantics=("parallel", "arbitrary"),
        ),
    )(xk, wk, uk, b2)

    return out, (h_final, c_final)


def _reference_forward(x, w, u, b):
    """Pure-JAX reference mirroring the PyTorch loop."""
    bs, seq, _ = x.shape
    H = u.shape[0]
    h = jnp.zeros((bs, H), jnp.float32)
    c = jnp.zeros((bs, H), jnp.float32)
    hs = []
    for t in range(seq):
        xt = x[:, t, :]
        gates = xt @ w + h @ u + b[None, :]
        i_t = jax.nn.sigmoid(gates[:, 0 * H:1 * H])
        f_t = jax.nn.sigmoid(gates[:, 1 * H:2 * H])
        g_t = jnp.tanh(gates[:, 2 * H:3 * H])
        o_t = jax.nn.sigmoid(gates[:, 3 * H:4 * H])
        c = f_t * c + i_t * g_t
        h = o_t * jnp.tanh(c)
        hs.append(h)
    return jnp.stack(hs, axis=0), (h, c)


if __name__ == "__main__":
    input_sz = 4
    hidden_sz = 32
    bs = 2
    seq = 8

    key = jax.random.PRNGKey(0)
    k_x, k_wi, k_ui, k_bi, k_wf, k_uf, k_bf, k_wc, k_uc, k_bc, k_wo, k_uo, k_bo = (
        jax.random.split(key, 13)
    )
    stdv = 1.0 / math.sqrt(hidden_sz)
    unif = lambda k, shape: jax.random.uniform(
        k, shape, jnp.float32, minval=-stdv, maxval=stdv
    )

    w_i, u_i, b_i = unif(k_wi, (input_sz, hidden_sz)), unif(k_ui, (hidden_sz, hidden_sz)), unif(k_bi, (hidden_sz,))
    w_f, u_f, b_f = unif(k_wf, (input_sz, hidden_sz)), unif(k_uf, (hidden_sz, hidden_sz)), unif(k_bf, (hidden_sz,))
    w_c, u_c, b_c = unif(k_wc, (input_sz, hidden_sz)), unif(k_uc, (hidden_sz, hidden_sz)), unif(k_bc, (hidden_sz,))
    w_o, u_o, b_o = unif(k_wo, (input_sz, hidden_sz)), unif(k_uo, (hidden_sz, hidden_sz)), unif(k_bo, (hidden_sz,))

    # Fuse gate parameters: order [i, f, c, o] along the output (lane) axis.
    W = jnp.concatenate([w_i, w_f, w_c, w_o], axis=1)  # (input_sz, 4H)
    U = jnp.concatenate([u_i, u_f, u_c, u_o], axis=1)  # (H, 4H)
    B = jnp.concatenate([b_i, b_f, b_c, b_o], axis=0)  # (4H,)

    x = jax.random.normal(k_x, (bs, seq, input_sz), jnp.float32)

    lstm_output, (h_t, c_t) = lstm_forward(x, W, U, B)
    jax.block_until_ready((lstm_output, h_t, c_t))

    # Sanity check against a pure-JAX reference of the same recurrence.
    ref_out, (ref_h, ref_c) = _reference_forward(x, W, U, B)
    assert lstm_output.shape == (seq, bs, hidden_sz)
    assert h_t.shape == (bs, hidden_sz) and c_t.shape == (bs, hidden_sz)
    assert jnp.allclose(lstm_output, ref_out, atol=1e-5, rtol=1e-5)
    assert jnp.allclose(h_t, ref_h, atol=1e-5, rtol=1e-5)
    assert jnp.allclose(c_t, ref_c, atol=1e-5, rtol=1e-5)

    print("KERNEL_OK")
</pallas_src>

<mosaic_0001>
module attributes {stable_mosaic.version = 11 : i64} {
  func.func @_lstm_kernel(%arg0: i32, %arg1: i32, %arg2: memref<2x8x4xf32, #tpu.memory_space<vmem>>, %arg3: memref<4x128xf32, #tpu.memory_space<vmem>>, %arg4: memref<32x128xf32, #tpu.memory_space<vmem>>, %arg5: memref<1x128xf32, #tpu.memory_space<vmem>>, %arg6: memref<8x2x32xf32, #tpu.memory_space<vmem>>, %arg7: memref<2x32xf32, #tpu.memory_space<vmem>>, %arg8: memref<2x32xf32, #tpu.memory_space<vmem>>, %arg9: memref<2x32xf32, #tpu.memory_space<vmem>>, %arg10: memref<2x32xf32, #tpu.memory_space<vmem>>) attributes {dimension_semantics = [#tpu.dimension_semantics<parallel>, #tpu.dimension_semantics<arbitrary>], iteration_bounds = array<i64: 1, 1>, scalar_prefetch = 0 : i64, scratch_operands = 2 : i64, tpu.core_type = #tpu.core_type<tc>, window_params = [{transform_indices = @transform_0, window_bounds = array<i64: 2, 8, 4>}, {pipeline_mode = #tpu.pipeline_mode<synchronous>, transform_indices = @transform_1, window_bounds = array<i64: 4, 128>}, {pipeline_mode = #tpu.pipeline_mode<synchronous>, transform_indices = @transform_2, window_bounds = array<i64: 32, 128>}, {pipeline_mode = #tpu.pipeline_mode<synchronous>, transform_indices = @transform_3, window_bounds = array<i64: 1, 128>}, {transform_indices = @transform_4, window_bounds = array<i64: 8, 2, 32>}, {transform_indices = @transform_5, window_bounds = array<i64: 2, 32>}, {transform_indices = @transform_6, window_bounds = array<i64: 2, 32>}]} {
    %c0_i32 = arith.constant 0 : i32
    %0 = arith.cmpi eq, %arg1, %c0_i32 : i32
    %1 = arith.extui %0 : i1 to i32
    %c0_i32_0 = arith.constant 0 : i32
    %2 = arith.cmpi ne, %1, %c0_i32_0 : i32
    scf.if %2 {
      %cst_84 = arith.constant 0.000000e+00 : f32
      %281 = vector.broadcast %cst_84 : f32 to vector<2x32xf32>
      %c0_85 = arith.constant 0 : index
      %c0_86 = arith.constant 0 : index
      %282 = vector.load %arg9[%c0_85, %c0_86] : memref<2x32xf32, #tpu.memory_space<vmem>>, vector<2x32xf32>
      tpu.vector_store %arg9[%c0_85, %c0_86], %281 {strides = array<i32>} : memref<2x32xf32, #tpu.memory_space<vmem>>, vector<2x32xf32>,
      %cst_87 = arith.constant 0.000000e+00 : f32
      %283 = vector.broadcast %cst_87 : f32 to vector<2x32xf32>
      %c0_88 = arith.constant 0 : index
      %c0_89 = arith.constant 0 : index
      %284 = vector.load %arg10[%c0_88, %c0_89] : memref<2x32xf32, #tpu.memory_space<vmem>>, vector<2x32xf32>
      tpu.vector_store %arg10[%c0_88, %c0_89], %283 {strides = array<i32>} : memref<2x32xf32, #tpu.memory_space<vmem>>, vector<2x32xf32>,
    } else {
    }
    %c0 = arith.constant 0 : index
    %c0_1 = arith.constant 0 : index
    %c0_2 = arith.constant 0 : index
    %3 = vector.load %arg2[%c0, %c0_1, %c0_2] : memref<2x8x4xf32, #tpu.memory_space<vmem>>, vector<2x8x4xf32>
    %4 = vector.shape_cast %3 : vector<2x8x4xf32> to vector<16x4xf32>
    %c0_3 = arith.constant 0 : index
    %c0_4 = arith.constant 0 : index
    %5 = vector.load %arg3[%c0_3, %c0_4] : memref<4x128xf32, #tpu.memory_space<vmem>>, vector<4x128xf32>
    %cst = arith.constant dense<0.000000e+00> : vector<16x128xf32>
    %6 = tpu.matmul %4, %5, %cst {dimension_numbers = #tpu.dot_dimension_numbers<[1], [0], [0], [1], [0, 0, 1, 1], [], []>} : vector<16x4xf32>, vector<4x128xf32>, vector<16x128xf32> -> vector<16x128xf32>
    %c0_5 = arith.constant 0 : index
    %c0_6 = arith.constant 0 : index
    %7 = vector.load %arg5[%c0_5, %c0_6] : memref<1x128xf32, #tpu.memory_space<vmem>>, vector<1x128xf32>
    %8 = vector.broadcast %7 : vector<1x128xf32> to vector<16x128xf32>
    %9 = arith.addf %6, %8 : vector<16x128xf32>
    %10 = vector.shape_cast %9 : vector<16x128xf32> to vector<2x8x128xf32>
    %c0_7 = arith.constant 0 : index
    %c0_8 = arith.constant 0 : index
    %11 = vector.load %arg9[%c0_7, %c0_8] : memref<2x32xf32, #tpu.memory_space<vmem>>, vector<2x32xf32>
    %c0_9 = arith.constant 0 : index
    %c0_10 = arith.constant 0 : index
    %12 = vector.load %arg10[%c0_9, %c0_10] : memref<2x32xf32, #tpu.memory_space<vmem>>, vector<2x32xf32>
    %13 = vector.extract_strided_slice %10 {offsets = [0, 0, 0], sizes = [2, 1, 128], strides = [1, 1, 1]} : vector<2x8x128xf32> to vector<2x1x128xf32>
    %14 = vector.shape_cast %13 : vector<2x1x128xf32> to vector<2x128xf32>
    %c0_11 = arith.constant 0 : index
    %c0_12 = arith.constant 0 : index
    %15 = vector.load %arg4[%c0_11, %c0_12] : memref<32x128xf32, #tpu.memory_space<vmem>>, vector<32x128xf32>
    %cst_13 = arith.constant dense<0.000000e+00> : vector<2x128xf32>
    %16 = tpu.matmul %11, %15, %cst_13 {dimension_numbers = #tpu.dot_dimension_numbers<[1], [0], [0], [1], [0, 0, 1, 1], [], []>} : vector<2x32xf32>, vector<32x128xf32>, vector<2x128xf32> -> vector<2x128xf32>
    %17 = arith.addf %14, %16 : vector<2x128xf32>
    %18 = vector.extract_strided_slice %17 {offsets = [0, 0], sizes = [2, 32], strides = [1, 1]} : vector<2x128xf32> to vector<2x32xf32>
    %19 = arith.negf %18 : vector<2x32xf32>
    %20 = math.exp %19 : vector<2x32xf32>
    %cst_14 = arith.constant 1.000000e+00 : f32
    %21 = vector.broadcast %cst_14 : f32 to vector<2x32xf32>
    %22 = arith.addf %21, %20 : vector<2x32xf32>
    %23 = arith.divf %21, %22 : vector<2x32xf32>
    %24 = vector.extract_strided_slice %17 {offsets = [0, 32], sizes = [2, 32], strides = [1, 1]} : vector<2x128xf32> to vector<2x32xf32>
    %25 = arith.negf %24 : vector<2x32xf32>
    %26 = math.exp %25 : vector<2x32xf32>
    %cst_15 = arith.constant 1.000000e+00 : f32
    %27 = vector.broadcast %cst_15 : f32 to vector<2x32xf32>
    %28 = arith.addf %27, %26 : vector<2x32xf32>
    %29 = arith.divf %27, %28 : vector<2x32xf32>
    %30 = vector.extract_strided_slice %17 {offsets = [0, 64], sizes = [2, 32], strides = [1, 1]} : vector<2x128xf32> to vector<2x32xf32>
    %31 = math.tanh %30 : vector<2x32xf32>
    %32 = vector.extract_strided_slice %17 {offsets = [0, 96], sizes = [2, 32], strides = [1, 1]} : vector<2x128xf32> to vector<2x32xf32>
    %33 = arith.negf %32 : vector<2x32xf32>
    %34 = math.exp %33 : vector<2x32xf32>
    %cst_16 = arith.constant 1.000000e+00 : f32
    %35 = vector.broadcast %cst_16 : f32 to vector<2x32xf32>
    %36 = arith.addf %35, %34 : vector<2x32xf32>
    %37 = arith.divf %35, %36 : vector<2x32xf32>
    %38 = arith.mulf %29, %12 : vector<2x32xf32>
    %39 = arith.mulf %23, %31 : vector<2x32xf32>
    %40 = arith.addf %38, %39 : vector<2x32xf32>
    %41 = math.tanh %40 : vector<2x32xf32>
    %42 = arith.mulf %37, %41 : vector<2x32xf32>
    %c0_17 = arith.constant 0 : index
    %c0_18 = arith.constant 0 : index
    %c0_19 = arith.constant 0 : index
    %43 = vector.load %arg6[%c0_17, %c0_18, %c0_19] : memref<8x2x32xf32, #tpu.memory_space<vmem>>, vector<1x2x32xf32>
    %44 = vector.shape_cast %43 : vector<1x2x32xf32> to vector<2x32xf32>
    %45 = vector.shape_cast %42 : vector<2x32xf32> to vector<1x2x32xf32>
    tpu.vector_store %arg6[%c0_17, %c0_18, %c0_19], %45 {strides = array<i32>} : memref<8x2x32xf32, #tpu.memory_space<vmem>>, vector<1x2x32xf32>,
    %46 = vector.extract_strided_slice %10 {offsets = [0, 1, 0], sizes = [2, 1, 128], strides = [1, 1, 1]} : vector<2x8x128xf32> to vector<2x1x128xf32>
    %47 = vector.shape_cast %46 : vector<2x1x128xf32> to vector<2x128xf32>
    %c0_20 = arith.constant 0 : index
    %c0_21 = arith.constant 0 : index
    %48 = vector.load %arg4[%c0_20, %c0_21] : memref<32x128xf32, #tpu.memory_space<vmem>>, vector<32x128xf32>
    %cst_22 = arith.constant dense<0.000000e+00> : vector<2x128xf32>
    %49 = tpu.matmul %42, %48, %cst_22 {dimension_numbers = #tpu.dot_dimension_numbers<[1], [0], [0], [1], [0, 0, 1, 1], [], []>} : vector<2x32xf32>, vector<32x128xf32>, vector<2x128xf32> -> vector<2x128xf32>
    %50 = arith.addf %47, %49 : vector<2x128xf32>
    %51 = vector.extract_strided_slice %50 {offsets = [0, 0], sizes = [2, 32], strides = [1, 1]} : vector<2x128xf32> to vector<2x32xf32>
    %52 = arith.negf %51 : vector<2x32xf32>
    %53 = math.exp %52 : vector<2x32xf32>
    %cst_23 = arith.constant 1.000000e+00 : f32
    %54 = vector.broadcast %cst_23 : f32 to vector<2x32xf32>
    %55 = arith.addf %54, %53 : vector<2x32xf32>
    %56 = arith.divf %54, %55 : vector<2x32xf32>
    %57 = vector.extract_strided_slice %50 {offsets = [0, 32], sizes = [2, 32], strides = [1, 1]} : vector<2x128xf32> to vector<2x32xf32>
    %58 = arith.negf %57 : vector<2x32xf32>
    %59 = math.exp %58 : vector<2x32xf32>
    %cst_24 = arith.constant 1.000000e+00 : f32
    %60 = vector.broadcast %cst_24 : f32 to vector<2x32xf32>
    %61 = arith.addf %60, %59 : vector<2x32xf32>
    %62 = arith.divf %60, %61 : vector<2x32xf32>
    %63 = vector.extract_strided_slice %50 {offsets = [0, 64], sizes = [2, 32], strides = [1, 1]} : vector<2x128xf32> to vector<2x32xf32>
    %64 = math.tanh %63 : vector<2x32xf32>
    %65 = vector.extract_strided_slice %50 {offsets = [0, 96], sizes = [2, 32], strides = [1, 1]} : vector<2x128xf32> to vector<2x32xf32>
    %66 = arith.negf %65 : vector<2x32xf32>
    %67 = math.exp %66 : vector<2x32xf32>
    %cst_25 = arith.constant 1.000000e+00 : f32
    %68 = vector.broadcast %cst_25 : f32 to vector<2x32xf32>
    %69 = arith.addf %68, %67 : vector<2x32xf32>
    %70 = arith.divf %68, %69 : vector<2x32xf32>
    %71 = arith.mulf %62, %40 : vector<2x32xf32>
    %72 = arith.mulf %56, %64 : vector<2x32xf32>
    %73 = arith.addf %71, %72 : vector<2x32xf32>
    %74 = math.tanh %73 : vector<2x32xf32>
    %75 = arith.mulf %70, %74 : vector<2x32xf32>
    %c1 = arith.constant 1 : index
    %c0_26 = arith.constant 0 : index
    %c0_27 = arith.constant 0 : index
    %76 = vector.load %arg6[%c1, %c0_26, %c0_27] : memref<8x2x32xf32, #tpu.memory_space<vmem>>, vector<1x2x32xf32>
    %77 = vector.shape_cast %76 : vector<1x2x32xf32> to vector<2x32xf32>
    %78 = vector.shape_cast %75 : vector<2x32xf32> to vector<1x2x32xf32>
    tpu.vector_store %arg6[%c1, %c0_26, %c0_27], %78 {strides = array<i32>} : memref<8x2x32xf32, #tpu.memory_space<vmem>>, vector<1x2x32xf32>,
    %79 = vector.extract_strided_slice %10 {offsets = [0, 2, 0], sizes = [2, 1, 128], strides = [1, 1, 1]} : vector<2x8x128xf32> to vector<2x1x128xf32>
    %80 = vector.shape_cast %79 : vector<2x1x128xf32> to vector<2x128xf32>
    %c0_28 = arith.constant 0 : index
    %c0_29 = arith.constant 0 : index
    %81 = vector.load %arg4[%c0_28, %c0_29] : memref<32x128xf32, #tpu.memory_space<vmem>>, vector<32x128xf32>
    %cst_30 = arith.constant dense<0.000000e+00> : vector<2x128xf32>
    %82 = tpu.matmul %75, %81, %cst_30 {dimension_numbers = #tpu.dot_dimension_numbers<[1], [0], [0], [1], [0, 0, 1, 1], [], []>} : vector<2x32xf32>, vector<32x128xf32>, vector<2x128xf32> -> vector<2x128xf32>
    %83 = arith.addf %80, %82 : vector<2x128xf32>
    %84 = vector.extract_strided_slice %83 {offsets = [0, 0], sizes = [2, 32], strides = [1, 1]} : vector<2x128xf32> to vector<2x32xf32>
    %85 = arith.negf %84 : vector<2x32xf32>
    %86 = math.exp %85 : vector<2x32xf32>
    %cst_31 = arith.constant 1.000000e+00 : f32
    %87 = vector.broadcast %cst_31 : f32 to vector<2x32xf32>
    %88 = arith.addf %87, %86 : vector<2x32xf32>
    %89 = arith.divf %87, %88 : vector<2x32xf32>
    %90 = vector.extract_strided_slice %83 {offsets = [0, 32], sizes = [2, 32], strides = [1, 1]} : vector<2x128xf32> to vector<2x32xf32>
    %91 = arith.negf %90 : vector<2x32xf32>
    %92 = math.exp %91 : vector<2x32xf32>
    %cst_32 = arith.constant 1.000000e+00 : f32
    %93 = vector.broadcast %cst_32 : f32 to vector<2x32xf32>
    %94 = arith.addf %93, %92 : vector<2x32xf32>
    %95 = arith.divf %93, %94 : vector<2x32xf32>
    %96 = vector.extract_strided_slice %83 {offsets = [0, 64], sizes = [2, 32], strides = [1, 1]} : vector<2x128xf32> to vector<2x32xf32>
    %97 = math.tanh %96 : vector<2x32xf32>
    %98 = vector.extract_strided_slice %83 {offsets = [0, 96], sizes = [2, 32], strides = [1, 1]} : vector<2x128xf32> to vector<2x32xf32>
    %99 = arith.negf %98 : vector<2x32xf32>
    %100 = math.exp %99 : vector<2x32xf32>
    %cst_33 = arith.constant 1.000000e+00 : f32
    %101 = vector.broadcast %cst_33 : f32 to vector<2x32xf32>
    %102 = arith.addf %101, %100 : vector<2x32xf32>
    %103 = arith.divf %101, %102 : vector<2x32xf32>
    %104 = arith.mulf %95, %73 : vector<2x32xf32>
    %105 = arith.mulf %89, %97 : vector<2x32xf32>
    %106 = arith.addf %104, %105 : vector<2x32xf32>
    %107 = math.tanh %106 : vector<2x32xf32>
    %108 = arith.mulf %103, %107 : vector<2x32xf32>
    %c2 = arith.constant 2 : index
    %c0_34 = arith.constant 0 : index
    %c0_35 = arith.constant 0 : index
    %109 = vector.load %arg6[%c2, %c0_34, %c0_35] : memref<8x2x32xf32, #tpu.memory_space<vmem>>, vector<1x2x32xf32>
    %110 = vector.shape_cast %109 : vector<1x2x32xf32> to vector<2x32xf32>
    %111 = vector.shape_cast %108 : vector<2x32xf32> to vector<1x2x32xf32>
    tpu.vector_store %arg6[%c2, %c0_34, %c0_35], %111 {strides = array<i32>} : memref<8x2x32xf32, #tpu.memory_space<vmem>>, vector<1x2x32xf32>,
    %112 = vector.extract_strided_slice %10 {offsets = [0, 3, 0], sizes = [2, 1, 128], strides = [1, 1, 1]} : vector<2x8x128xf32> to vector<2x1x128xf32>
    %113 = vector.shape_cast %112 : vector<2x1x128xf32> to vector<2x128xf32>
    %c0_36 = arith.constant 0 : index
    %c0_37 = arith.constant 0 : index
    %114 = vector.load %arg4[%c0_36, %c0_37] : memref<32x128xf32, #tpu.memory_space<vmem>>, vector<32x128xf32>
    %cst_38 = arith.constant dense<0.000000e+00> : vector<2x128xf32>
    %115 = tpu.matmul %108, %114, %cst_38 {dimension_numbers = #tpu.dot_dimension_numbers<[1], [0], [0], [1], [0, 0, 1, 1], [], []>} : vector<2x32xf32>, vector<32x128xf32>, vector<2x128xf32> -> vector<2x128xf32>
    %116 = arith.addf %113, %115 : vector<2x128xf32>
    %117 = vector.extract_strided_slice %116 {offsets = [0, 0], sizes = [2, 32], strides = [1, 1]} : vector<2x128xf32> to vector<2x32xf32>
    %118 = arith.negf %117 : vector<2x32xf32>
    %119 = math.exp %118 : vector<2x32xf32>
    %cst_39 = arith.constant 1.000000e+00 : f32
    %120 = vector.broadcast %cst_39 : f32 to vector<2x32xf32>
    %121 = arith.addf %120, %119 : vector<2x32xf32>
    %122 = arith.divf %120, %121 : vector<2x32xf32>
    %123 = vector.extract_strided_slice %116 {offsets = [0, 32], sizes = [2, 32], strides = [1, 1]} : vector<2x128xf32> to vector<2x32xf32>
    %124 = arith.negf %123 : vector<2x32xf32>
    %125 = math.exp %124 : vector<2x32xf32>
    %cst_40 = arith.constant 1.000000e+00 : f32
    %126 = vector.broadcast %cst_40 : f32 to vector<2x32xf32>
    %127 = arith.addf %126, %125 : vector<2x32xf32>
    %128 = arith.divf %126, %127 : vector<2x32xf32>
    %129 = vector.extract_strided_slice %116 {offsets = [0, 64], sizes = [2, 32], strides = [1, 1]} : vector<2x128xf32> to vector<2x32xf32>
    %130 = math.tanh %129 : vector<2x32xf32>
    %131 = vector.extract_strided_slice %116 {offsets = [0, 96], sizes = [2, 32], strides = [1, 1]} : vector<2x128xf32> to vector<2x32xf32>
    %132 = arith.negf %131 : vector<2x32xf32>
    %133 = math.exp %132 : vector<2x32xf32>
    %cst_41 = arith.constant 1.000000e+00 : f32
    %134 = vector.broadcast %cst_41 : f32 to vector<2x32xf32>
    %135 = arith.addf %134, %133 : vector<2x32xf32>
    %136 = arith.divf %134, %135 : vector<2x32xf32>
    %137 = arith.mulf %128, %106 : vector<2x32xf32>
    %138 = arith.mulf %122, %130 : vector<2x32xf32>
    %139 = arith.addf %137, %138 : vector<2x32xf32>
    %140 = math.tanh %139 : vector<2x32xf32>
    %141 = arith.mulf %136, %140 : vector<2x32xf32>
    %c3 = arith.constant 3 : index
    %c0_42 = arith.constant 0 : index
    %c0_43 = arith.constant 0 : index
    %142 = vector.load %arg6[%c3, %c0_42, %c0_43] : memref<8x2x32xf32, #tpu.memory_space<vmem>>, vector<1x2x32xf32>
    %143 = vector.shape_cast %142 : vector<1x2x32xf32> to vector<2x32xf32>
    %144 = vector.shape_cast %141 : vector<2x32xf32> to vector<1x2x32xf32>
    tpu.vector_store %arg6[%c3, %c0_42, %c0_43], %144 {strides = array<i32>} : memref<8x2x32xf32, #tpu.memory_space<vmem>>, vector<1x2x32xf32>,
    %145 = vector.extract_strided_slice %10 {offsets = [0, 4, 0], sizes = [2, 1, 128], strides = [1, 1, 1]} : vector<2x8x128xf32> to vector<2x1x128xf32>
    %146 = vector.shape_cast %145 : vector<2x1x128xf32> to vector<2x128xf32>
    %c0_44 = arith.constant 0 : index
    %c0_45 = arith.constant 0 : index
    %147 = vector.load %arg4[%c0_44, %c0_45] : memref<32x128xf32, #tpu.memory_space<vmem>>, vector<32x128xf32>
    %cst_46 = arith.constant dense<0.000000e+00> : vector<2x128xf32>
    %148 = tpu.matmul %141, %147, %cst_46 {dimension_numbers = #tpu.dot_dimension_numbers<[1], [0], [0], [1], [0, 0, 1, 1], [], []>} : vector<2x32xf32>, vector<32x128xf32>, vector<2x128xf32> -> vector<2x128xf32>
    %149 = arith.addf %146, %148 : vector<2x128xf32>
    %150 = vector.extract_strided_slice %149 {offsets = [0, 0], sizes = [2, 32], strides = [1, 1]} : vector<2x128xf32> to vector<2x32xf32>
    %151 = arith.negf %150 : vector<2x32xf32>
    %152 = math.exp %151 : vector<2x32xf32>
    %cst_47 = arith.constant 1.000000e+00 : f32
    %153 = vector.broadcast %cst_47 : f32 to vector<2x32xf32>
    %154 = arith.addf %153, %152 : vector<2x32xf32>
    %155 = arith.divf %153, %154 : vector<2x32xf32>
    %156 = vector.extract_strided_slice %149 {offsets = [0, 32], sizes = [2, 32], strides = [1, 1]} : vector<2x128xf32> to vector<2x32xf32>
    %157 = arith.negf %156 : vector<2x32xf32>
    %158 = math.exp %157 : vector<2x32xf32>
    %cst_48 = arith.constant 1.000000e+00 : f32
    %159 = vector.broadcast %cst_48 : f32 to vector<2x32xf32>
    %160 = arith.addf %159, %158 : vector<2x32xf32>
    %161 = arith.divf %159, %160 : vector<2x32xf32>
    %162 = vector.extract_strided_slice %149 {offsets = [0, 64], sizes = [2, 32], strides = [1, 1]} : vector<2x128xf32> to vector<2x32xf32>
    %163 = math.tanh %162 : vector<2x32xf32>
    %164 = vector.extract_strided_slice %149 {offsets = [0, 96], sizes = [2, 32], strides = [1, 1]} : vector<2x128xf32> to vector<2x32xf32>
    %165 = arith.negf %164 : vector<2x32xf32>
    %166 = math.exp %165 : vector<2x32xf32>
    %cst_49 = arith.constant 1.000000e+00 : f32
    %167 = vector.broadcast %cst_49 : f32 to vector<2x32xf32>
    %168 = arith.addf %167, %166 : vector<2x32xf32>
    %169 = arith.divf %167, %168 : vector<2x32xf32>
    %170 = arith.mulf %161, %139 : vector<2x32xf32>
    %171 = arith.mulf %155, %163 : vector<2x32xf32>
    %172 = arith.addf %170, %171 : vector<2x32xf32>
    %173 = math.tanh %172 : vector<2x32xf32>
    %174 = arith.mulf %169, %173 : vector<2x32xf32>
    %c4 = arith.constant 4 : index
    %c0_50 = arith.constant 0 : index
    %c0_51 = arith.constant 0 : index
    %175 = vector.load %arg6[%c4, %c0_50, %c0_51] : memref<8x2x32xf32, #tpu.memory_space<vmem>>, vector<1x2x32xf32>
    %176 = vector.shape_cast %175 : vector<1x2x32xf32> to vector<2x32xf32>
    %177 = vector.shape_cast %174 : vector<2x32xf32> to vector<1x2x32xf32>
    tpu.vector_store %arg6[%c4, %c0_50, %c0_51], %177 {strides = array<i32>} : memref<8x2x32xf32, #tpu.memory_space<vmem>>, vector<1x2x32xf32>,
    %178 = vector.extract_strided_slice %10 {offsets = [0, 5, 0], sizes = [2, 1, 128], strides = [1, 1, 1]} : vector<2x8x128xf32> to vector<2x1x128xf32>
    %179 = vector.shape_cast %178 : vector<2x1x128xf32> to vector<2x128xf32>
    %c0_52 = arith.constant 0 : index
    %c0_53 = arith.constant 0 : index
    %180 = vector.load %arg4[%c0_52, %c0_53] : memref<32x128xf32, #tpu.memory_space<vmem>>, vector<32x128xf32>
    %cst_54 = arith.constant dense<0.000000e+00> : vector<2x128xf32>
    %181 = tpu.matmul %174, %180, %cst_54 {dimension_numbers = #tpu.dot_dimension_numbers<[1], [0], [0], [1], [0, 0, 1, 1], [], []>} : vector<2x32xf32>, vector<32x128xf32>, vector<2x128xf32> -> vector<2x128xf32>
    %182 = arith.addf %179, %181 : vector<2x128xf32>
    %183 = vector.extract_strided_slice %182 {offsets = [0, 0], sizes = [2, 32], strides = [1, 1]} : vector<2x128xf32> to vector<2x32xf32>
    %184 = arith.negf %183 : vector<2x32xf32>
    %185 = math.exp %184 : vector<2x32xf32>
    %cst_55 = arith.constant 1.000000e+00 : f32
    %186 = vector.broadcast %cst_55 : f32 to vector<2x32xf32>
    %187 = arith.addf %186, %185 : vector<2x32xf32>
    %188 = arith.divf %186, %187 : vector<2x32xf32>
    %189 = vector.extract_strided_slice %182 {offsets = [0, 32], sizes = [2, 32], strides = [1, 1]} : vector<2x128xf32> to vector<2x32xf32>
    %190 = arith.negf %189 : vector<2x32xf32>
    %191 = math.exp %190 : vector<2x32xf32>
    %cst_56 = arith.constant 1.000000e+00 : f32
    %192 = vector.broadcast %cst_56 : f32 to vector<2x32xf32>
    %193 = arith.addf %192, %191 : vector<2x32xf32>
    %194 = arith.divf %192, %193 : vector<2x32xf32>
    %195 = vector.extract_strided_slice %182 {offsets = [0, 64], sizes = [2, 32], strides = [1, 1]} : vector<2x128xf32> to vector<2x32xf32>
    %196 = math.tanh %195 : vector<2x32xf32>
    %197 = vector.extract_strided_slice %182 {offsets = [0, 96], sizes = [2, 32], strides = [1, 1]} : vector<2x128xf32> to vector<2x32xf32>
    %198 = arith.negf %197 : vector<2x32xf32>
    %199 = math.exp %198 : vector<2x32xf32>
    %cst_57 = arith.constant 1.000000e+00 : f32
    %200 = vector.broadcast %cst_57 : f32 to vector<2x32xf32>
    %201 = arith.addf %200, %199 : vector<2x32xf32>
    %202 = arith.divf %200, %201 : vector<2x32xf32>
    %203 = arith.mulf %194, %172 : vector<2x32xf32>
    %204 = arith.mulf %188, %196 : vector<2x32xf32>
    %205 = arith.addf %203, %204 : vector<2x32xf32>
    %206 = math.tanh %205 : vector<2x32xf32>
    %207 = arith.mulf %202, %206 : vector<2x32xf32>
    %c5 = arith.constant 5 : index
    %c0_58 = arith.constant 0 : index
    %c0_59 = arith.constant 0 : index
    %208 = vector.load %arg6[%c5, %c0_58, %c0_59] : memref<8x2x32xf32, #tpu.memory_space<vmem>>, vector<1x2x32xf32>
    %209 = vector.shape_cast %208 : vector<1x2x32xf32> to vector<2x32xf32>
    %210 = vector.shape_cast %207 : vector<2x32xf32> to vector<1x2x32xf32>
    tpu.vector_store %arg6[%c5, %c0_58, %c0_59], %210 {strides = array<i32>} : memref<8x2x32xf32, #tpu.memory_space<vmem>>, vector<1x2x32xf32>,
    %211 = vector.extract_strided_slice %10 {offsets = [0, 6, 0], sizes = [2, 1, 128], strides = [1, 1, 1]} : vector<2x8x128xf32> to vector<2x1x128xf32>
    %212 = vector.shape_cast %211 : vector<2x1x128xf32> to vector<2x128xf32>
    %c0_60 = arith.constant 0 : index
    %c0_61 = arith.constant 0 : index
    %213 = vector.load %arg4[%c0_60, %c0_61] : memref<32x128xf32, #tpu.memory_space<vmem>>, vector<32x128xf32>
    %cst_62 = arith.constant dense<0.000000e+00> : vector<2x128xf32>
    %214 = tpu.matmul %207, %213, %cst_62 {dimension_numbers = #tpu.dot_dimension_numbers<[1], [0], [0], [1], [0, 0, 1, 1], [], []>} : vector<2x32xf32>, vector<32x128xf32>, vector<2x128xf32> -> vector<2x128xf32>
    %215 = arith.addf %212, %214 : vector<2x128xf32>
    %216 = vector.extract_strided_slice %215 {offsets = [0, 0], sizes = [2, 32], strides = [1, 1]} : vector<2x128xf32> to vector<2x32xf32>
    %217 = arith.negf %216 : vector<2x32xf32>
    %218 = math.exp %217 : vector<2x32xf32>
    %cst_63 = arith.constant 1.000000e+00 : f32
    %219 = vector.broadcast %cst_63 : f32 to vector<2x32xf32>
    %220 = arith.addf %219, %218 : vector<2x32xf32>
    %221 = arith.divf %219, %220 : vector<2x32xf32>
    %222 = vector.extract_strided_slice %215 {offsets = [0, 32], sizes = [2, 32], strides = [1, 1]} : vector<2x128xf32> to vector<2x32xf32>
    %223 = arith.negf %222 : vector<2x32xf32>
    %224 = math.exp %223 : vector<2x32xf32>
    %cst_64 = arith.constant 1.000000e+00 : f32
    %225 = vector.broadcast %cst_64 : f32 to vector<2x32xf32>
    %226 = arith.addf %225, %224 : vector<2x32xf32>
    %227 = arith.divf %225, %226 : vector<2x32xf32>
    %228 = vector.extract_strided_slice %215 {offsets = [0, 64], sizes = [2, 32], strides = [1, 1]} : vector<2x128xf32> to vector<2x32xf32>
    %229 = math.tanh %228 : vector<2x32xf32>
    %230 = vector.extract_strided_slice %215 {offsets = [0, 96], sizes = [2, 32], strides = [1, 1]} : vector<2x128xf32> to vector<2x32xf32>
    %231 = arith.negf %230 : vector<2x32xf32>
    %232 = math.exp %231 : vector<2x32xf32>
    %cst_65 = arith.constant 1.000000e+00 : f32
    %233 = vector.broadcast %cst_65 : f32 to vector<2x32xf32>
    %234 = arith.addf %233, %232 : vector<2x32xf32>
    %235 = arith.divf %233, %234 : vector<2x32xf32>
    %236 = arith.mulf %227, %205 : vector<2x32xf32>
    %237 = arith.mulf %221, %229 : vector<2x32xf32>
    %238 = arith.addf %236, %237 : vector<2x32xf32>
    %239 = math.tanh %238 : vector<2x32xf32>
    %240 = arith.mulf %235, %239 : vector<2x32xf32>
    %c6 = arith.constant 6 : index
    %c0_66 = arith.constant 0 : index
    %c0_67 = arith.constant 0 : index
    %241 = vector.load %arg6[%c6, %c0_66, %c0_67] : memref<8x2x32xf32, #tpu.memory_space<vmem>>, vector<1x2x32xf32>
    %242 = vector.shape_cast %241 : vector<1x2x32xf32> to vector<2x32xf32>
    %243 = vector.shape_cast %240 : vector<2x32xf32> to vector<1x2x32xf32>
    tpu.vector_store %arg6[%c6, %c0_66, %c0_67], %243 {strides = array<i32>} : memref<8x2x32xf32, #tpu.memory_space<vmem>>, vector<1x2x32xf32>,
    %244 = vector.extract_strided_slice %10 {offsets = [0, 7, 0], sizes = [2, 1, 128], strides = [1, 1, 1]} : vector<2x8x128xf32> to vector<2x1x128xf32>
    %245 = vector.shape_cast %244 : vector<2x1x128xf32> to vector<2x128xf32>
    %c0_68 = arith.constant 0 : index
    %c0_69 = arith.constant 0 : index
    %246 = vector.load %arg4[%c0_68, %c0_69] : memref<32x128xf32, #tpu.memory_space<vmem>>, vector<32x128xf32>
    %cst_70 = arith.constant dense<0.000000e+00> : vector<2x128xf32>
    %247 = tpu.matmul %240, %246, %cst_70 {dimension_numbers = #tpu.dot_dimension_numbers<[1], [0], [0], [1], [0, 0, 1, 1], [], []>} : vector<2x32xf32>, vector<32x128xf32>, vector<2x128xf32> -> vector<2x128xf32>
    %248 = arith.addf %245, %247 : vector<2x128xf32>
    %249 = vector.extract_strided_slice %248 {offsets = [0, 0], sizes = [2, 32], strides = [1, 1]} : vector<2x128xf32> to vector<2x32xf32>
    %250 = arith.negf %249 : vector<2x32xf32>
    %251 = math.exp %250 : vector<2x32xf32>
    %cst_71 = arith.constant 1.000000e+00 : f32
    %252 = vector.broadcast %cst_71 : f32 to vector<2x32xf32>
    %253 = arith.addf %252, %251 : vector<2x32xf32>
    %254 = arith.divf %252, %253 : vector<2x32xf32>
    %255 = vector.extract_strided_slice %248 {offsets = [0, 32], sizes = [2, 32], strides = [1, 1]} : vector<2x128xf32> to vector<2x32xf32>
    %256 = arith.negf %255 : vector<2x32xf32>
    %257 = math.exp %256 : vector<2x32xf32>
    %cst_72 = arith.constant 1.000000e+00 : f32
    %258 = vector.broadcast %cst_72 : f32 to vector<2x32xf32>
    %259 = arith.addf %258, %257 : vector<2x32xf32>
    %260 = arith.divf %258, %259 : vector<2x32xf32>
    %261 = vector.extract_strided_slice %248 {offsets = [0, 64], sizes = [2, 32], strides = [1, 1]} : vector<2x128xf32> to vector<2x32xf32>
    %262 = math.tanh %261 : vector<2x32xf32>
    %263 = vector.extract_strided_slice %248 {offsets = [0, 96], sizes = [2, 32], strides = [1, 1]} : vector<2x128xf32> to vector<2x32xf32>
    %264 = arith.negf %263 : vector<2x32xf32>
    %265 = math.exp %264 : vector<2x32xf32>
    %cst_73 = arith.constant 1.000000e+00 : f32
    %266 = vector.broadcast %cst_73 : f32 to vector<2x32xf32>
    %267 = arith.addf %266, %265 : vector<2x32xf32>
    %268 = arith.divf %266, %267 : vector<2x32xf32>
    %269 = arith.mulf %260, %238 : vector<2x32xf32>
    %270 = arith.mulf %254, %262 : vector<2x32xf32>
    %271 = arith.addf %269, %270 : vector<2x32xf32>
    %272 = math.tanh %271 : vector<2x32xf32>
    %273 = arith.mulf %268, %272 : vector<2x32xf32>
    %c7 = arith.constant 7 : index
    %c0_74 = arith.constant 0 : index
    %c0_75 = arith.constant 0 : index
    %274 = vector.load %arg6[%c7, %c0_74, %c0_75] : memref<8x2x32xf32, #tpu.memory_space<vmem>>, vector<1x2x32xf32>
    %275 = vector.shape_cast %274 : vector<1x2x32xf32> to vector<2x32xf32>
    %276 = vector.shape_cast %273 : vector<2x32xf32> to vector<1x2x32xf32>
    tpu.vector_store %arg6[%c7, %c0_74, %c0_75], %276 {strides = array<i32>} : memref<8x2x32xf32, #tpu.memory_space<vmem>>, vector<1x2x32xf32>,
    %c0_76 = arith.constant 0 : index
    %c0_77 = arith.constant 0 : index
    %277 = vector.load %arg9[%c0_76, %c0_77] : memref<2x32xf32, #tpu.memory_space<vmem>>, vector<2x32xf32>
    tpu.vector_store %arg9[%c0_76, %c0_77], %273 {strides = array<i32>} : memref<2x32xf32, #tpu.memory_space<vmem>>, vector<2x32xf32>,
    %c0_78 = arith.constant 0 : index
    %c0_79 = arith.constant 0 : index
    %278 = vector.load %arg10[%c0_78, %c0_79] : memref<2x32xf32, #tpu.memory_space<vmem>>, vector<2x32xf32>
    tpu.vector_store %arg10[%c0_78, %c0_79], %271 {strides = array<i32>} : memref<2x32xf32, #tpu.memory_space<vmem>>, vector<2x32xf32>,
    %c0_80 = arith.constant 0 : index
    %c0_81 = arith.constant 0 : index
    %279 = vector.load %arg7[%c0_80, %c0_81] : memref<2x32xf32, #tpu.memory_space<vmem>>, vector<2x32xf32>
    tpu.vector_store %arg7[%c0_80, %c0_81], %273 {strides = array<i32>} : memref<2x32xf32, #tpu.memory_space<vmem>>, vector<2x32xf32>,
    %c0_82 = arith.constant 0 : index
    %c0_83 = arith.constant 0 : index
    %280 = vector.load %arg8[%c0_82, %c0_83] : memref<2x32xf32, #tpu.memory_space<vmem>>, vector<2x32xf32>
    tpu.vector_store %arg8[%c0_82, %c0_83], %271 {strides = array<i32>} : memref<2x32xf32, #tpu.memory_space<vmem>>, vector<2x32xf32>,
    return
  }
  func.func @transform_0(%arg0: i32, %arg1: i32) -> (i32, i32, i32) {
    %c0_i32 = arith.constant 0 : i32
    %c0_i32_0 = arith.constant 0 : i32
    return %arg0, %arg1, %c0_i32 : i32, i32, i32
  }
  func.func @transform_1(%arg0: i32, %arg1: i32) -> (i32, i32) {
    %c0_i32 = arith.constant 0 : i32
    %c0_i32_0 = arith.constant 0 : i32
    %c0_i32_1 = arith.constant 0 : i32
    return %c0_i32, %c0_i32_0 : i32, i32
  }
  func.func @transform_2(%arg0: i32, %arg1: i32) -> (i32, i32) {
    %c0_i32 = arith.constant 0 : i32
    %c0_i32_0 = arith.constant 0 : i32
    %c0_i32_1 = arith.constant 0 : i32
    return %c0_i32, %c0_i32_0 : i32, i32
  }
  func.func @transform_3(%arg0: i32, %arg1: i32) -> (i32, i32) {
    %c0_i32 = arith.constant 0 : i32
    %c0_i32_0 = arith.constant 0 : i32
    %c0_i32_1 = arith.constant 0 : i32
    return %c0_i32, %c0_i32_0 : i32, i32
  }
  func.func @transform_4(%arg0: i32, %arg1: i32) -> (i32, i32, i32) {
    %c0_i32 = arith.constant 0 : i32
    %c0_i32_0 = arith.constant 0 : i32
    return %arg1, %arg0, %c0_i32 : i32, i32, i32
  }
  func.func @transform_5(%arg0: i32, %arg1: i32) -> (i32, i32) {
    %c0_i32 = arith.constant 0 : i32
    %c0_i32_0 = arith.constant 0 : i32
    return %arg0, %c0_i32 : i32, i32
  }
  func.func @transform_6(%arg0: i32, %arg1: i32) -> (i32, i32) {
    %c0_i32 = arith.constant 0 : i32
    %c0_i32_0 = arith.constant 0 : i32
    return %arg0, %c0_i32 : i32, i32
  }
}

</mosaic_0001>

<llo_original>
// kernel: tpu_custom_call.1
$region0: #{tpu_custom_call.1}
  #allocation0 [shape = 'u32[]', space=smem, size = 0x4, offset = 0x4, fixed_abs, tag = 'smem constant byte address 0x4 - core index']
  #allocation1 [shape = 'u32[144,128]{1,0:T(1,128)}', space=vmem, size = 0x12000, scoped, tag = 'internal scratch']
  #allocation2 [shape = 'f32[2,32]{1,0:T(2,128)}', space=vmem, size = 0x400, scoped, tag = 'scratch operand']
  #allocation3 [shape = 'f32[2,32]{1,0:T(2,128)}', space=vmem, size = 0x400, scoped, tag = 'scratch operand']
  %s0 = inlined_call_operand.vmem [shape: f32[2,8,4], index: 0, kind: input, shape index: {}]
  %s1 = inlined_call_operand.vmem [shape: f32[4,128], index: 1, kind: input, shape index: {}]
  %s2 = inlined_call_operand.hbm [shape: f32[32,128], index: 2, kind: input, shape index: {}]
  %s3 = inlined_call_operand.vmem [shape: f32[1,128], index: 3, kind: input, shape index: {}]
  %s4 = inlined_call_operand.hbm [shape: f32[8,2,32], index: 4, kind: output, shape index: {0}]
  %s5 = inlined_call_operand.hbm [shape: f32[2,32], index: 5, kind: output, shape index: {1}]
  %s6 = inlined_call_operand.hbm [shape: f32[2,32], index: 6, kind: output, shape index: {2}]
  %7 = xla_tuple %s4, %s5, %s6
  %s8 = sld [smem:[#allocation0]]
  $region50: #{tpu_custom_call.1} parent=0
    _
  %s10 = ssub.s32 1, %s8
  %s11 = scalar_select 0, %s10, %s8
  $region1: #{tpu_custom_call.1} parent=0
    #allocation4 [shape = 'u8[16384]{0}', space=vmem, size = 0x4000, scoped, tag = 'input window, operand 2, single buffered']
    #allocation5 [shape = 's32[1]{0}', space=sflag, size = 0x4, scoped, tag = 'scoped memory for tpu_custom_call.1']
    #allocation6 [shape = 's32[1]{0}', space=sflag, size = 0x4, scoped, tag = 'scoped memory for tpu_custom_call.1']
    #allocation7 [shape = 'u8[8192]{0}', space=vmem, size = 0x2000, scoped, tag = 'output window, operand 0, single buffered']
    #allocation8 [shape = 'u8[1024]{0}', space=vmem, size = 0x400, scoped, tag = 'output window, operand 1, single buffered']
    #allocation9 [shape = 's32[1]{0}', space=sflag, size = 0x4, scoped, tag = 'scoped memory for tpu_custom_call.1']
    #allocation10 [shape = 'u8[1024]{0}', space=vmem, size = 0x400, scoped, tag = 'output window, operand 2, single buffered']
    %12 = vsyncpa [#allocation5], 0
    %13 = vsyncpa [#allocation6], 0
    %14 = vsyncpa [#allocation9], 0
    // Predicated region
    $region2: #{tpu_custom_call.1} parent=1 // pred_check
      _
    $region3: #{tpu_custom_call.1} parent=1 // pred_check_branch
      %16 = sbr.rel (0) target = $region5
    $region4: #{tpu_custom_call.1} parent=1 // pred_region
      _
    $region5: #{tpu_custom_call.1} parent=1 // pred_fallthru
      _
    // Predicated region
    $region6: #{tpu_custom_call.1} parent=1 // pred_check
      _
    $region7: #{tpu_custom_call.1} parent=1 // pred_check_branch
      %18 = sbr.rel (0) target = $region9
    $region8: #{tpu_custom_call.1} parent=1 // pred_region
      _
    $region9: #{tpu_custom_call.1} parent=1 // pred_fallthru
      _
    // Predicated region
    $region10: #{tpu_custom_call.1} parent=1 // pred_check
      _
    $region11: #{tpu_custom_call.1} parent=1 // pred_check_branch
      %20 = sbr.rel (0) target = $region13
    $region12: #{tpu_custom_call.1} parent=1 // pred_region
      %s22 = ssub.s32 512, 512
      %23 = vsyncadd [#allocation5], %s22
      %s24 = sshll.u32 [#allocation4], 4
      %s25 = int_to_ptr.vmem [resolvable:$true] %s24
      %30 = dma.hbm_to_vmem [thread:$0]  %s2, 512, %s25, [#allocation5], 128, 128, 8
    $region13: #{tpu_custom_call.1} parent=1 // pred_fallthru
      _
    // Predicated region
    $region14: #{tpu_custom_call.1} parent=1 // pred_check
      _
    $region15: #{tpu_custom_call.1} parent=1 // pred_check_branch
      %32 = sbr.rel (0) target = $region17
    $region16: #{tpu_custom_call.1} parent=1 // pred_region
      _
    $region17: #{tpu_custom_call.1} parent=1 // pred_fallthru
      _
    // Predicated region
    $region18: #{tpu_custom_call.1} parent=1 // pred_check
      _
    $region19: #{tpu_custom_call.1} parent=1 // pred_check_branch
      %34 = sbr.rel (0) target = $region21
    $region20: #{tpu_custom_call.1} parent=1 // pred_region
      %35 = dma.done [#allocation5], 512
    $region21: #{tpu_custom_call.1} parent=1 // pred_fallthru
      _
    %p36 = scmp.eq.s32.totalorder 0, 0
    // Predicated region
    $region22: #{tpu_custom_call.1} parent=1 // pred_check
      %p37 = pneg %p36
    $region23: #{tpu_custom_call.1} parent=1 // pred_check_branch
      %39 = sbr.rel (%p37) target = $region25
    $region24: #{tpu_custom_call.1} parent=1 // pred_region
      %vm40 = vcmask 254976
      %41 = vst.msk [vmem:[#allocation2] sm:$0x3] %vm40, 0.0
      %42 = vst.msk [vmem:[#allocation3] sm:$0x3] %vm40, 0.0
    $region25: #{tpu_custom_call.1} parent=1 // pred_fallthru
      _
    %v43 = vld [vmem:[%s0] sm:$0xff]
    %v44 = vld [vmem:[%s0 + $0x8] sm:$0xff]
    %v45 = vld [vmem:[%s1] sm:$0xf]
    %v46 = vld [vmem:[%s3] sm:$0x1]
    %v48 = vlaneseq
    %v49 = vshrl.u32 %v48, 7
    %v50 = vsub.s32 0, %v49
    %v51 = vrot.slane %v46, %v50
    %vm53 = vcmask 31744
    %v55 = vsel %vm53, %v43, 0
    %v58 = vsel %vm53, %v44, 0
    %vm60 = vcmask 1043456
    %v62 = vsel %vm60, %v45, 0
    %64 = vmatprep.subr.mxu0 0.0
    %65 = vmatpush1.msra.mxu0 %v62
    %66 = vmatprep.subr.mxu0 0.0
    %67 = vmatpush1.msra.mxu0 0.0
    %68 = vmatprep.subr.mxu0 0.0
    %69 = vmatpush1.msra.mxu0 0.0
    %70 = vmatprep.subr.mxu0 0.0
    %71 = vmatpush1.msra.mxu0 0.0
    %72 = vmatprep.subr.mxu0 0.0
    %73 = vmatpush1.msra.mxu0 0.0
    %74 = vmatprep.subr.mxu0 0.0
    %75 = vmatpush1.msra.mxu0 0.0
    %76 = vmatprep.subr.mxu0 0.0
    %77 = vmatpush1.msra.mxu0 0.0
    %78 = vmatprep.subr.mxu0 0.0
    %79 = vmatpush1.msra.mxu0 0.0
    %80 = vmatprep.subr.mxu0 0.0
    %81 = vmatpush1.msra.mxu0 0.0
    %82 = vmatprep.subr.mxu0 0.0
    %83 = vmatpush1.msra.mxu0 0.0
    %84 = vmatprep.subr.mxu0 0.0
    %85 = vmatpush1.msra.mxu0 0.0
    %86 = vmatprep.subr.mxu0 0.0
    %87 = vmatpush1.msra.mxu0 0.0
    %88 = vmatprep.subr.mxu0 0.0
    %89 = vmatpush1.msra.mxu0 0.0
    %90 = vmatprep.subr.mxu0 0.0
    %91 = vmatpush1.msra.mxu0 0.0
    %92 = vmatprep.subr.mxu0 0.0
    %93 = vmatpush1.msra.mxu0 0.0
    %94 = vmatprep.subr.mxu0 0.0
    %95 = vmatpush1.msra.mxu0 0.0
    %96 = vmatprep.subr.mxu0 0.0
    %97 = vmatpush1.msra.mxu0 0.0
    %98 = vmatprep.subr.mxu0 0.0
    %99 = vmatpush1.msra.mxu0 0.0
    %100 = vmatprep.subr.mxu0 0.0
    %101 = vmatpush1.msra.mxu0 0.0
    %102 = vmatprep.subr.mxu0 0.0
    %103 = vmatpush1.msra.mxu0 0.0
    %104 = vmatprep.subr.mxu0 0.0
    %105 = vmatpush1.msra.mxu0 0.0
    %106 = vmatprep.subr.mxu0 0.0
    %107 = vmatpush1.msra.mxu0 0.0
    %108 = vmatprep.subr.mxu0 0.0
    %109 = vmatpush1.msra.mxu0 0.0
    %110 = vmatprep.subr.mxu0 0.0
    %111 = vmatpush1.msra.mxu0 0.0
    %112 = vmatprep.subr.mxu0 0.0
    %113 = vmatpush1.msra.mxu0 0.0
    %114 = vmatprep.subr.mxu0 0.0
    %115 = vmatpush1.msra.mxu0 0.0
    %116 = vmatprep.subr.mxu0 0.0
    %117 = vmatpush1.msra.mxu0 0.0
    %118 = vmatprep.subr.mxu0 0.0
    %119 = vmatpush1.msra.mxu0 0.0
    %120 = vmatprep.subr.mxu0 0.0
    %121 = vmatpush1.msra.mxu0 0.0
    %122 = vmatprep.subr.mxu0 0.0
    %123 = vmatpush1.msra.mxu0 0.0
    %124 = vmatprep.subr.mxu0 0.0
    %125 = vmatpush1.msra.mxu0 0.0
    %126 = vmatprep.subr.mxu0 0.0
    %127 = vmatpush1.msra.mxu0 0.0
    %128 = vmatprep.mubr.f32.mxu0 0.0
    %129 = vmatmul.mubr.f32.gmra.mrb[0].mxu0 %v55
    %v130 = vpop.f32.mrb[0].mxu0
    %v131 = vadd.f32 %v51, %v130
    %v132 = vpop.f32.mrb[0].mxu0
    %133 = vmatprep.mubr.f32.mxu0 0.0
    %134 = vmatmul.mubr.f32.gmra.mrb[0].mxu0 %v58
    %v135 = vpop.f32.mrb[0].mxu0
    %v136 = vadd.f32 %v51, %v135
    %v137 = vpop.f32.mrb[0].mxu0
    %138 = vdwg.mxu0
    %v139 = vld [vmem:[#allocation2] sm:$0x3]
    %v140 = vld [vmem:[#allocation3] sm:$0x3]
    %v141 = vld [vmem:[#allocation4] sm:$0xff]
    %v142 = vld [vmem:[#allocation4 + $0x8] sm:$0xff]
    %v143 = vld [vmem:[#allocation4 + $0x10] sm:$0xff]
    %v144 = vld [vmem:[#allocation4 + $0x18] sm:$0xff]
    %vm145 = vcmask 261120
    %v147 = vsel %vm145, %v139, 0
    %149 = vmatprep.subr.mxu0 0.0
    %150 = vmatpush1.msra.mxu0 %v141
    %151 = vmatprep.subr.mxu0 0.0
    %152 = vmatpush1.msra.mxu0 %v142
    %153 = vmatprep.subr.mxu0 0.0
    %154 = vmatpush1.msra.mxu0 %v143
    %155 = vmatprep.subr.mxu0 0.0
    %156 = vmatpush1.msra.mxu0 %v144
    %157 = vmatprep.subr.mxu0 0.0
    %158 = vmatpush1.msra.mxu0 0.0
    %159 = vmatprep.subr.mxu0 0.0
    %160 = vmatpush1.msra.mxu0 0.0
    %161 = vmatprep.subr.mxu0 0.0
    %162 = vmatpush1.msra.mxu0 0.0
    %163 = vmatprep.subr.mxu0 0.0
    %164 = vmatpush1.msra.mxu0 0.0
    %165 = vmatprep.subr.mxu0 0.0
    %166 = vmatpush1.msra.mxu0 0.0
    %167 = vmatprep.subr.mxu0 0.0
    %168 = vmatpush1.msra.mxu0 0.0
    %169 = vmatprep.subr.mxu0 0.0
    %170 = vmatpush1.msra.mxu0 0.0
    %171 = vmatprep.subr.mxu0 0.0
    %172 = vmatpush1.msra.mxu0 0.0
    %173 = vmatprep.subr.mxu0 0.0
    %174 = vmatpush1.msra.mxu0 0.0
    %175 = vmatprep.subr.mxu0 0.0
    %176 = vmatpush1.msra.mxu0 0.0
    %177 = vmatprep.subr.mxu0 0.0
    %178 = vmatpush1.msra.mxu0 0.0
    %179 = vmatprep.subr.mxu0 0.0
    %180 = vmatpush1.msra.mxu0 0.0
    %181 = vmatprep.subr.mxu0 0.0
    %182 = vmatpush1.msra.mxu0 0.0
    %183 = vmatprep.subr.mxu0 0.0
    %184 = vmatpush1.msra.mxu0 0.0
    %185 = vmatprep.subr.mxu0 0.0
    %186 = vmatpush1.msra.mxu0 0.0
    %187 = vmatprep.subr.mxu0 0.0
    %188 = vmatpush1.msra.mxu0 0.0
    %189 = vmatprep.subr.mxu0 0.0
    %190 = vmatpush1.msra.mxu0 0.0
    %191 = vmatprep.subr.mxu0 0.0
    %192 = vmatpush1.msra.mxu0 0.0
    %193 = vmatprep.subr.mxu0 0.0
    %194 = vmatpush1.msra.mxu0 0.0
    %195 = vmatprep.subr.mxu0 0.0
    %196 = vmatpush1.msra.mxu0 0.0
    %197 = vmatprep.subr.mxu0 0.0
    %198 = vmatpush1.msra.mxu0 0.0
    %199 = vmatprep.subr.mxu0 0.0
    %200 = vmatpush1.msra.mxu0 0.0
    %201 = vmatprep.subr.mxu0 0.0
    %202 = vmatpush1.msra.mxu0 0.0
    %203 = vmatprep.subr.mxu0 0.0
    %204 = vmatpush1.msra.mxu0 0.0
    %205 = vmatprep.subr.mxu0 0.0
    %206 = vmatpush1.msra.mxu0 0.0
    %207 = vmatprep.subr.mxu0 0.0
    %208 = vmatpush1.msra.mxu0 0.0
    %209 = vmatprep.subr.mxu0 0.0
    %210 = vmatpush1.msra.mxu0 0.0
    %211 = vmatprep.subr.mxu0 0.0
    %212 = vmatpush1.msra.mxu0 0.0
    %213 = vmatprep.mubr.f32.mxu0 0.0
    %214 = vmatmul.mubr.f32.gmra.mrb[0].mxu0 %v147
    %v215 = vpop.f32.mrb[0].mxu0
    %v216 = vadd.f32 0.0, %v215
    %v217 = vpop.f32.mrb[0].mxu0
    %218 = vdwg.mxu0
    %v220 = vrot.slane %v216, 1
    %v223 = vadd.f32 %v131, %v216
    %v224 = vadd.f32 %v136, %v220
    %v225 = vxor.u32 %v223, 2147483648
    %v226 = vxor.u32 %v224, 2147483648
    %v227 = vmul.f32 %v225, 1.442695
    %v228 = vpow.pop %v227
    %v229 = vmul.f32 %v226, 1.442695
    %v230 = vpow.pop %v229
    %v231 = vadd.f32 %v228, 1.0
    %v232 = vadd.f32 %v230, 1.0
    %v233 = vrcp.pop %v231
    %v234 = vmul.f32 1.0, %v233
    %v235 = vrcp.pop %v232
    %v236 = vmul.f32 1.0, %v235
    %v237 = vtanh.pop %v223
    %v238 = vtanh.pop %v224
    %v240 = vrot.slane %v140, 1
    %241 = vrot.lane.b32.xlu0 %v140, 32
    %v242 = vpop.permute.xlu0 %241
    %243 = vrot.lane.b32.xlu0 %v240, 32
    %v244 = vpop.permute.xlu0 %243
    %v247 = vmul.f32 %v234, %v242
    %v248 = vmul.f32 %v236, %v244
    %251 = vrot.lane.b32.xlu0 %v237, 64
    %v252 = vpop.permute.xlu0 %251
    %253 = vrot.lane.b32.xlu0 %v238, 64
    %v254 = vpop.permute.xlu0 %253
    %v257 = vmul.f32 %v234, %v252
    %v258 = vmul.f32 %v236, %v254
    %261 = vrot.lane.b32.xlu0 %v257, 32
    %v262 = vpop.permute.xlu0 %261
    %263 = vrot.lane.b32.xlu0 %v258, 32
    %v264 = vpop.permute.xlu0 %263
    %v267 = vadd.f32 %v247, %v262
    %v268 = vadd.f32 %v248, %v264
    %v269 = vtanh.pop %v267
    %v270 = vtanh.pop %v268
    %273 = vrot.lane.b32.xlu0 %v269, 64
    %v274 = vpop.permute.xlu0 %273
    %275 = vrot.lane.b32.xlu0 %v270, 64
    %v276 = vpop.permute.xlu0 %275
    %v279 = vmul.f32 %v234, %v274
    %v280 = vmul.f32 %v236, %v276
    %v283 = vrot.slane %v280, 7
    %vm284 = vcmask 1041409
    %v285 = vsel %vm284, %v283, %v279
    %286 = vrot.lane.b32.xlu0 %v285, 32
    %v287 = vpop.permute.xlu0 %286
    %vm289 = vcmask 254976
    %290 = vst.msk [vmem:[#allocation7] sm:$0x3] %vm289, %v287
    %v291 = vld [vmem:[#allocation4] sm:$0xff]
    %v292 = vld [vmem:[#allocation4 + $0x8] sm:$0xff]
    %v293 = vld [vmem:[#allocation4 + $0x10] sm:$0xff]
    %v294 = vld [vmem:[#allocation4 + $0x18] sm:$0xff]
    %v295 = vsel %vm145, %v287, 0
    %297 = vmatprep.subr.mxu0 0.0
    %298 = vmatpush1.msra.mxu0 %v291
    %299 = vmatprep.subr.mxu0 0.0
    %300 = vmatpush1.msra.mxu0 %v292
    %301 = vmatprep.subr.mxu0 0.0
    %302 = vmatpush1.msra.mxu0 %v293
    %303 = vmatprep.subr.mxu0 0.0
    %304 = vmatpush1.msra.mxu0 %v294
    %305 = vmatprep.subr.mxu0 0.0
    %306 = vmatpush1.msra.mxu0 0.0
    %307 = vmatprep.subr.mxu0 0.0
    %308 = vmatpush1.msra.mxu0 0.0
    %309 = vmatprep.subr.mxu0 0.0
    %310 = vmatpush1.msra.mxu0 0.0
    %311 = vmatprep.subr.mxu0 0.0
    %312 = vmatpush1.msra.mxu0 0.0
    %313 = vmatprep.subr.mxu0 0.0
    %314 = vmatpush1.msra.mxu0 0.0
    %315 = vmatprep.subr.mxu0 0.0
    %316 = vmatpush1.msra.mxu0 0.0
    %317 = vmatprep.subr.mxu0 0.0
    %318 = vmatpush1.msra.mxu0 0.0
    %319 = vmatprep.subr.mxu0 0.0
    %320 = vmatpush1.msra.mxu0 0.0
    %321 = vmatprep.subr.mxu0 0.0
    %322 = vmatpush1.msra.mxu0 0.0
    %323 = vmatprep.subr.mxu0 0.0
    %324 = vmatpush1.msra.mxu0 0.0
    %325 = vmatprep.subr.mxu0 0.0
    %326 = vmatpush1.msra.mxu0 0.0
    %327 = vmatprep.subr.mxu0 0.0
    %328 = vmatpush1.msra.mxu0 0.0
    %329 = vmatprep.subr.mxu0 0.0
    %330 = vmatpush1.msra.mxu0 0.0
    %331 = vmatprep.subr.mxu0 0.0
    %332 = vmatpush1.msra.mxu0 0.0
    %333 = vmatprep.subr.mxu0 0.0
    %334 = vmatpush1.msra.mxu0 0.0
    %335 = vmatprep.subr.mxu0 0.0
    %336 = vmatpush1.msra.mxu0 0.0
    %337 = vmatprep.subr.mxu0 0.0
    %338 = vmatpush1.msra.mxu0 0.0
    %339 = vmatprep.subr.mxu0 0.0
    %340 = vmatpush1.msra.mxu0 0.0
    %341 = vmatprep.subr.mxu0 0.0
    %342 = vmatpush1.msra.mxu0 0.0
    %343 = vmatprep.subr.mxu0 0.0
    %344 = vmatpush1.msra.mxu0 0.0
    %345 = vmatprep.subr.mxu0 0.0
    %346 = vmatpush1.msra.mxu0 0.0
    %347 = vmatprep.subr.mxu0 0.0
    %348 = vmatpush1.msra.mxu0 0.0
    %349 = vmatprep.subr.mxu0 0.0
    %350 = vmatpush1.msra.mxu0 0.0
    %351 = vmatprep.subr.mxu0 0.0
    %352 = vmatpush1.msra.mxu0 0.0
    %353 = vmatprep.subr.mxu0 0.0
    %354 = vmatpush1.msra.mxu0 0.0
    %355 = vmatprep.subr.mxu0 0.0
    %356 = vmatpush1.msra.mxu0 0.0
    %357 = vmatprep.subr.mxu0 0.0
    %358 = vmatpush1.msra.mxu0 0.0
    %359 = vmatprep.subr.mxu0 0.0
    %360 = vmatpush1.msra.mxu0 0.0
    %361 = vmatprep.mubr.f32.mxu0 0.0
    %362 = vmatmul.mubr.f32.gmra.mrb[0].mxu0 %v295
    %v363 = vpop.f32.mrb[0].mxu0
    %v364 = vadd.f32 0.0, %v363
    %v365 = vpop.f32.mrb[0].mxu0
    %366 = vdwg.mxu0
    %v368 = vrot.slane %v364, 7
    %v371 = vadd.f32 %v131, %v368
    %v372 = vadd.f32 %v136, %v364
    %v373 = vxor.u32 %v371, 2147483648
    %v374 = vxor.u32 %v372, 2147483648
    %v375 = vmul.f32 %v373, 1.442695
    %v376 = vpow.pop %v375
    %v377 = vmul.f32 %v374, 1.442695
    %v378 = vpow.pop %v377
    %v379 = vadd.f32 %v376, 1.0
    %v380 = vadd.f32 %v378, 1.0
    %v381 = vrcp.pop %v379
    %v382 = vmul.f32 1.0, %v381
    %v383 = vrcp.pop %v380
    %v384 = vmul.f32 1.0, %v383
    %v385 = vtanh.pop %v371
    %v386 = vtanh.pop %v372
    %v389 = vrot.slane %v267, 7
    %v390 = vrot.slane %v268, 7
    %v393 = vmul.f32 %v382, %v389
    %v394 = vmul.f32 %v384, %v390
    %397 = vrot.lane.b32.xlu0 %v385, 64
    %v398 = vpop.permute.xlu0 %397
    %399 = vrot.lane.b32.xlu0 %v386, 64
    %v400 = vpop.permute.xlu0 %399
    %v403 = vmul.f32 %v382, %v398
    %v404 = vmul.f32 %v384, %v400
    %407 = vrot.lane.b32.xlu0 %v403, 32
    %v408 = vpop.permute.xlu0 %407
    %409 = vrot.lane.b32.xlu0 %v404, 32
    %v410 = vpop.permute.xlu0 %409
    %v413 = vadd.f32 %v393, %v408
    %v414 = vadd.f32 %v394, %v410
    %v415 = vtanh.pop %v413
    %v416 = vtanh.pop %v414
    %419 = vrot.lane.b32.xlu0 %v415, 64
    %v420 = vpop.permute.xlu0 %419
    %421 = vrot.lane.b32.xlu0 %v416, 64
    %v422 = vpop.permute.xlu0 %421
    %v425 = vmul.f32 %v382, %v420
    %v426 = vmul.f32 %v384, %v422
    %v429 = vrot.slane %v426, 7
    %vm430 = vcmask 1042434
    %v431 = vsel %vm430, %v429, %v425
    %432 = vrot.lane.b32.xlu0 %v431, 32
    %v433 = vpop.permute.xlu0 %432
    %s435 = scalar_lea.vmem [#allocation7], 2
    %vm436 = vcmask 256001
    %437 = vst.msk [vmem:[%s435 - $0x1] sm:$0x6] %vm436, %v433
    %v438 = vld [vmem:[#allocation4] sm:$0xff]
    %v439 = vld [vmem:[#allocation4 + $0x8] sm:$0xff]
    %v440 = vld [vmem:[#allocation4 + $0x10] sm:$0xff]
    %v441 = vld [vmem:[#allocation4 + $0x18] sm:$0xff]
    %v442 = vrot.slane %v425, 1
    %v443 = vsel %vm284, %v426, %v442
    %444 = vrot.lane.b32.xlu0 %v443, 32
    %v445 = vpop.permute.xlu0 %444
    %v446 = vsel %vm145, %v445, 0
    %448 = vmatprep.subr.mxu0 0.0
    %449 = vmatpush1.msra.mxu0 %v438
    %450 = vmatprep.subr.mxu0 0.0
    %451 = vmatpush1.msra.mxu0 %v439
    %452 = vmatprep.subr.mxu0 0.0
    %453 = vmatpush1.msra.mxu0 %v440
    %454 = vmatprep.subr.mxu0 0.0
    %455 = vmatpush1.msra.mxu0 %v441
    %456 = vmatprep.subr.mxu0 0.0
    %457 = vmatpush1.msra.mxu0 0.0
    %458 = vmatprep.subr.mxu0 0.0
    %459 = vmatpush1.msra.mxu0 0.0
    %460 = vmatprep.subr.mxu0 0.0
    %461 = vmatpush1.msra.mxu0 0.0
    %462 = vmatprep.subr.mxu0 0.0
    %463 = vmatpush1.msra.mxu0 0.0
    %464 = vmatprep.subr.mxu0 0.0
    %465 = vmatpush1.msra.mxu0 0.0
    %466 = vmatprep.subr.mxu0 0.0
    %467 = vmatpush1.msra.mxu0 0.0
    %468 = vmatprep.subr.mxu0 0.0
    %469 = vmatpush1.msra.mxu0 0.0
    %470 = vmatprep.subr.mxu0 0.0
    %471 = vmatpush1.msra.mxu0 0.0
    %472 = vmatprep.subr.mxu0 0.0
    %473 = vmatpush1.msra.mxu0 0.0
    %474 = vmatprep.subr.mxu0 0.0
    %475 = vmatpush1.msra.mxu0 0.0
    %476 = vmatprep.subr.mxu0 0.0
    %477 = vmatpush1.msra.mxu0 0.0
    %478 = vmatprep.subr.mxu0 0.0
    %479 = vmatpush1.msra.mxu0 0.0
    %480 = vmatprep.subr.mxu0 0.0
    %481 = vmatpush1.msra.mxu0 0.0
    %482 = vmatprep.subr.mxu0 0.0
    %483 = vmatpush1.msra.mxu0 0.0
    %484 = vmatprep.subr.mxu0 0.0
    %485 = vmatpush1.msra.mxu0 0.0
    %486 = vmatprep.subr.mxu0 0.0
    %487 = vmatpush1.msra.mxu0 0.0
    %488 = vmatprep.subr.mxu0 0.0
    %489 = vmatpush1.msra.mxu0 0.0
    %490 = vmatprep.subr.mxu0 0.0
    %491 = vmatpush1.msra.mxu0 0.0
    %492 = vmatprep.subr.mxu0 0.0
    %493 = vmatpush1.msra.mxu0 0.0
    %494 = vmatprep.subr.mxu0 0.0
    %495 = vmatpush1.msra.mxu0 0.0
    %496 = vmatprep.subr.mxu0 0.0
    %497 = vmatpush1.msra.mxu0 0.0
    %498 = vmatprep.subr.mxu0 0.0
    %499 = vmatpush1.msra.mxu0 0.0
    %500 = vmatprep.subr.mxu0 0.0
    %501 = vmatpush1.msra.mxu0 0.0
    %502 = vmatprep.subr.mxu0 0.0
    %503 = vmatpush1.msra.mxu0 0.0
    %504 = vmatprep.subr.mxu0 0.0
    %505 = vmatpush1.msra.mxu0 0.0
    %506 = vmatprep.subr.mxu0 0.0
    %507 = vmatpush1.msra.mxu0 0.0
    %508 = vmatprep.subr.mxu0 0.0
    %509 = vmatpush1.msra.mxu0 0.0
    %510 = vmatprep.subr.mxu0 0.0
    %511 = vmatpush1.msra.mxu0 0.0
    %512 = vmatprep.mubr.f32.mxu0 0.0
    %513 = vmatmul.mubr.f32.gmra.mrb[0].mxu0 %v446
    %v514 = vpop.f32.mrb[0].mxu0
    %v515 = vadd.f32 0.0, %v514
    %v516 = vpop.f32.mrb[0].mxu0
    %517 = vdwg.mxu0
    %v519 = vrot.slane %v515, 6
    %v520 = vrot.slane %v515, 7
    %v523 = vadd.f32 %v131, %v519
    %v524 = vadd.f32 %v136, %v520
    %v525 = vxor.u32 %v523, 2147483648
    %v526 = vxor.u32 %v524, 2147483648
    %v527 = vmul.f32 %v525, 1.442695
    %v528 = vpow.pop %v527
    %v529 = vmul.f32 %v526, 1.442695
    %v530 = vpow.pop %v529
    %v531 = vadd.f32 %v528, 1.0
    %v532 = vadd.f32 %v530, 1.0
    %v533 = vrcp.pop %v531
    %v534 = vmul.f32 1.0, %v533
    %v535 = vrcp.pop %v532
    %v536 = vmul.f32 1.0, %v535
    %v537 = vtanh.pop %v523
    %v538 = vtanh.pop %v524
    %v541 = vrot.slane %v413, 7
    %v542 = vrot.slane %v414, 7
    %v545 = vmul.f32 %v534, %v541
    %v546 = vmul.f32 %v536, %v542
    %549 = vrot.lane.b32.xlu0 %v537, 64
    %v550 = vpop.permute.xlu0 %549
    %551 = vrot.lane.b32.xlu0 %v538, 64
    %v552 = vpop.permute.xlu0 %551
    %v555 = vmul.f32 %v534, %v550
    %v556 = vmul.f32 %v536, %v552
    %559 = vrot.lane.b32.xlu0 %v555, 32
    %v560 = vpop.permute.xlu0 %559
    %561 = vrot.lane.b32.xlu0 %v556, 32
    %v562 = vpop.permute.xlu0 %561
    %v565 = vadd.f32 %v545, %v560
    %v566 = vadd.f32 %v546, %v562
    %v567 = vtanh.pop %v565
    %v568 = vtanh.pop %v566
    %571 = vrot.lane.b32.xlu0 %v567, 64
    %v572 = vpop.permute.xlu0 %571
    %573 = vrot.lane.b32.xlu0 %v568, 64
    %v574 = vpop.permute.xlu0 %573
    %v577 = vmul.f32 %v534, %v572
    %v578 = vmul.f32 %v536, %v574
    %v581 = vrot.slane %v578, 7
    %vm582 = vcmask 1043459
    %v583 = vsel %vm582, %v581, %v577
    %584 = vrot.lane.b32.xlu0 %v583, 32
    %v585 = vpop.permute.xlu0 %584
    %s587 = scalar_lea.vmem [#allocation7], 4
    %vm588 = vcmask 257026
    %589 = vst.msk [vmem:[%s587 - $0x2] sm:$0xc] %vm588, %v585
    %v590 = vld [vmem:[#allocation4] sm:$0xff]
    %v591 = vld [vmem:[#allocation4 + $0x8] sm:$0xff]
    %v592 = vld [vmem:[#allocation4 + $0x10] sm:$0xff]
    %v593 = vld [vmem:[#allocation4 + $0x18] sm:$0xff]
    %v594 = vrot.slane %v577, 2
    %v595 = vrot.slane %v578, 1
    %v596 = vsel %vm284, %v595, %v594
    %597 = vrot.lane.b32.xlu0 %v596, 32
    %v598 = vpop.permute.xlu0 %597
    %v599 = vsel %vm145, %v598, 0
    %601 = vmatprep.subr.mxu0 0.0
    %602 = vmatpush1.msra.mxu0 %v590
    %603 = vmatprep.subr.mxu0 0.0
    %604 = vmatpush1.msra.mxu0 %v591
    %605 = vmatprep.subr.mxu0 0.0
    %606 = vmatpush1.msra.mxu0 %v592
    %607 = vmatprep.subr.mxu0 0.0
    %608 = vmatpush1.msra.mxu0 %v593
    %609 = vmatprep.subr.mxu0 0.0
    %610 = vmatpush1.msra.mxu0 0.0
    %611 = vmatprep.subr.mxu0 0.0
    %612 = vmatpush1.msra.mxu0 0.0
    %613 = vmatprep.subr.mxu0 0.0
    %614 = vmatpush1.msra.mxu0 0.0
    %615 = vmatprep.subr.mxu0 0.0
    %616 = vmatpush1.msra.mxu0 0.0
    %617 = vmatprep.subr.mxu0 0.0
    %618 = vmatpush1.msra.mxu0 0.0
    %619 = vmatprep.subr.mxu0 0.0
    %620 = vmatpush1.msra.mxu0 0.0
    %621 = vmatprep.subr.mxu0 0.0
    %622 = vmatpush1.msra.mxu0 0.0
    %623 = vmatprep.subr.mxu0 0.0
    %624 = vmatpush1.msra.mxu0 0.0
    %625 = vmatprep.subr.mxu0 0.0
    %626 = vmatpush1.msra.mxu0 0.0
    %627 = vmatprep.subr.mxu0 0.0
    %628 = vmatpush1.msra.mxu0 0.0
    %629 = vmatprep.subr.mxu0 0.0
    %630 = vmatpush1.msra.mxu0 0.0
    %631 = vmatprep.subr.mxu0 0.0
    %632 = vmatpush1.msra.mxu0 0.0
    %633 = vmatprep.subr.mxu0 0.0
    %634 = vmatpush1.msra.mxu0 0.0
    %635 = vmatprep.subr.mxu0 0.0
    %636 = vmatpush1.msra.mxu0 0.0
    %637 = vmatprep.subr.mxu0 0.0
    %638 = vmatpush1.msra.mxu0 0.0
    %639 = vmatprep.subr.mxu0 0.0
    %640 = vmatpush1.msra.mxu0 0.0
    %641 = vmatprep.subr.mxu0 0.0
    %642 = vmatpush1.msra.mxu0 0.0
    %643 = vmatprep.subr.mxu0 0.0
    %644 = vmatpush1.msra.mxu0 0.0
    %645 = vmatprep.subr.mxu0 0.0
    %646 = vmatpush1.msra.mxu0 0.0
    %647 = vmatprep.subr.mxu0 0.0
    %648 = vmatpush1.msra.mxu0 0.0
    %649 = vmatprep.subr.mxu0 0.0
    %650 = vmatpush1.msra.mxu0 0.0
    %651 = vmatprep.subr.mxu0 0.0
    %652 = vmatpush1.msra.mxu0 0.0
    %653 = vmatprep.subr.mxu0 0.0
    %654 = vmatpush1.msra.mxu0 0.0
    %655 = vmatprep.subr.mxu0 0.0
    %656 = vmatpush1.msra.mxu0 0.0
    %657 = vmatprep.subr.mxu0 0.0
    %658 = vmatpush1.msra.mxu0 0.0
    %659 = vmatprep.subr.mxu0 0.0
    %660 = vmatpush1.msra.mxu0 0.0
    %661 = vmatprep.subr.mxu0 0.0
    %662 = vmatpush1.msra.mxu0 0.0
    %663 = vmatprep.subr.mxu0 0.0
    %664 = vmatpush1.msra.mxu0 0.0
    %665 = vmatprep.mubr.f32.mxu0 0.0
    %666 = vmatmul.mubr.f32.gmra.mrb[0].mxu0 %v599
    %v667 = vpop.f32.mrb[0].mxu0
    %v668 = vadd.f32 0.0, %v667
    %v669 = vpop.f32.mrb[0].mxu0
    %670 = vdwg.mxu0
    %v672 = vrot.slane %v668, 5
    %v673 = vrot.slane %v668, 6
    %v676 = vadd.f32 %v131, %v672
    %v677 = vadd.f32 %v136, %v673
    %v678 = vxor.u32 %v676, 2147483648
    %v679 = vxor.u32 %v677, 2147483648
    %v680 = vmul.f32 %v678, 1.442695
    %v681 = vpow.pop %v680
    %v682 = vmul.f32 %v679, 1.442695
    %v683 = vpow.pop %v682
    %v684 = vadd.f32 %v681, 1.0
    %v685 = vadd.f32 %v683, 1.0
    %v686 = vrcp.pop %v684
    %v687 = vmul.f32 1.0, %v686
    %v688 = vrcp.pop %v685
    %v689 = vmul.f32 1.0, %v688
    %v690 = vtanh.pop %v676
    %v691 = vtanh.pop %v677
    %v694 = vrot.slane %v565, 7
    %v695 = vrot.slane %v566, 7
    %v698 = vmul.f32 %v687, %v694
    %v699 = vmul.f32 %v689, %v695
    %702 = vrot.lane.b32.xlu0 %v690, 64
    %v703 = vpop.permute.xlu0 %702
    %704 = vrot.lane.b32.xlu0 %v691, 64
    %v705 = vpop.permute.xlu0 %704
    %v708 = vmul.f32 %v687, %v703
    %v709 = vmul.f32 %v689, %v705
    %712 = vrot.lane.b32.xlu0 %v708, 32
    %v713 = vpop.permute.xlu0 %712
    %714 = vrot.lane.b32.xlu0 %v709, 32
    %v715 = vpop.permute.xlu0 %714
    %v718 = vadd.f32 %v698, %v713
    %v719 = vadd.f32 %v699, %v715
    %v720 = vtanh.pop %v718
    %v721 = vtanh.pop %v719
    %724 = vrot.lane.b32.xlu0 %v720, 64
    %v725 = vpop.permute.xlu0 %724
    %726 = vrot.lane.b32.xlu0 %v721, 64
    %v727 = vpop.permute.xlu0 %726
    %v730 = vmul.f32 %v687, %v725
    %v731 = vmul.f32 %v689, %v727
    %v734 = vrot.slane %v731, 7
    %vm735 = vcmask 1044484
    %v736 = vsel %vm735, %v734, %v730
    %737 = vrot.lane.b32.xlu0 %v736, 32
    %v738 = vpop.permute.xlu0 %737
    %s740 = scalar_lea.vmem [#allocation7], 6
    %vm741 = vcmask 258051
    %742 = vst.msk [vmem:[%s740 - $0x3] sm:$0x18] %vm741, %v738
    %v743 = vld [vmem:[#allocation4] sm:$0xff]
    %v744 = vld [vmem:[#allocation4 + $0x8] sm:$0xff]
    %v745 = vld [vmem:[#allocation4 + $0x10] sm:$0xff]
    %v746 = vld [vmem:[#allocation4 + $0x18] sm:$0xff]
    %v747 = vrot.slane %v730, 3
    %v748 = vrot.slane %v731, 2
    %v749 = vsel %vm284, %v748, %v747
    %750 = vrot.lane.b32.xlu0 %v749, 32
    %v751 = vpop.permute.xlu0 %750
    %v752 = vsel %vm145, %v751, 0
    %754 = vmatprep.subr.mxu0 0.0
    %755 = vmatpush1.msra.mxu0 %v743
    %756 = vmatprep.subr.mxu0 0.0
    %757 = vmatpush1.msra.mxu0 %v744
    %758 = vmatprep.subr.mxu0 0.0
    %759 = vmatpush1.msra.mxu0 %v745
    %760 = vmatprep.subr.mxu0 0.0
    %761 = vmatpush1.msra.mxu0 %v746
    %762 = vmatprep.subr.mxu0 0.0
    %763 = vmatpush1.msra.mxu0 0.0
    %764 = vmatprep.subr.mxu0 0.0
    %765 = vmatpush1.msra.mxu0 0.0
    %766 = vmatprep.subr.mxu0 0.0
    %767 = vmatpush1.msra.mxu0 0.0
    %768 = vmatprep.subr.mxu0 0.0
    %769 = vmatpush1.msra.mxu0 0.0
    %770 = vmatprep.subr.mxu0 0.0
    %771 = vmatpush1.msra.mxu0 0.0
    %772 = vmatprep.subr.mxu0 0.0
    %773 = vmatpush1.msra.mxu0 0.0
    %774 = vmatprep.subr.mxu0 0.0
    %775 = vmatpush1.msra.mxu0 0.0
    %776 = vmatprep.subr.mxu0 0.0
    %777 = vmatpush1.msra.mxu0 0.0
    %778 = vmatprep.subr.mxu0 0.0
    %779 = vmatpush1.msra.mxu0 0.0
    %780 = vmatprep.subr.mxu0 0.0
    %781 = vmatpush1.msra.mxu0 0.0
    %782 = vmatprep.subr.mxu0 0.0
    %783 = vmatpush1.msra.mxu0 0.0
    %784 = vmatprep.subr.mxu0 0.0
    %785 = vmatpush1.msra.mxu0 0.0
    %786 = vmatprep.subr.mxu0 0.0
    %787 = vmatpush1.msra.mxu0 0.0
    %788 = vmatprep.subr.mxu0 0.0
    %789 = vmatpush1.msra.mxu0 0.0
    %790 = vmatprep.subr.mxu0 0.0
    %791 = vmatpush1.msra.mxu0 0.0
    %792 = vmatprep.subr.mxu0 0.0
    %793 = vmatpush1.msra.mxu0 0.0
    %794 = vmatprep.subr.mxu0 0.0
    %795 = vmatpush1.msra.mxu0 0.0
    %796 = vmatprep.subr.mxu0 0.0
    %797 = vmatpush1.msra.mxu0 0.0
    %798 = vmatprep.subr.mxu0 0.0
    %799 = vmatpush1.msra.mxu0 0.0
    %800 = vmatprep.subr.mxu0 0.0
    %801 = vmatpush1.msra.mxu0 0.0
    %802 = vmatprep.subr.mxu0 0.0
    %803 = vmatpush1.msra.mxu0 0.0
    %804 = vmatprep.subr.mxu0 0.0
    %805 = vmatpush1.msra.mxu0 0.0
    %806 = vmatprep.subr.mxu0 0.0
    %807 = vmatpush1.msra.mxu0 0.0
    %808 = vmatprep.subr.mxu0 0.0
    %809 = vmatpush1.msra.mxu0 0.0
    %810 = vmatprep.subr.mxu0 0.0
    %811 = vmatpush1.msra.mxu0 0.0
    %812 = vmatprep.subr.mxu0 0.0
    %813 = vmatpush1.msra.mxu0 0.0
    %814 = vmatprep.subr.mxu0 0.0
    %815 = vmatpush1.msra.mxu0 0.0
    %816 = vmatprep.subr.mxu0 0.0
    %817 = vmatpush1.msra.mxu0 0.0
    %818 = vmatprep.mubr.f32.mxu0 0.0
    %819 = vmatmul.mubr.f32.gmra.mrb[0].mxu0 %v752
    %v820 = vpop.f32.mrb[0].mxu0
    %v821 = vadd.f32 0.0, %v820
    %v822 = vpop.f32.mrb[0].mxu0
    %823 = vdwg.mxu0
    %v825 = vrot.slane %v821, 4
    %v826 = vrot.slane %v821, 5
    %v829 = vadd.f32 %v131, %v825
    %v830 = vadd.f32 %v136, %v826
    %v831 = vxor.u32 %v829, 2147483648
    %v832 = vxor.u32 %v830, 2147483648
    %v833 = vmul.f32 %v831, 1.442695
    %v834 = vpow.pop %v833
    %v835 = vmul.f32 %v832, 1.442695
    %v836 = vpow.pop %v835
    %v837 = vadd.f32 %v834, 1.0
    %v838 = vadd.f32 %v836, 1.0
    %v839 = vrcp.pop %v837
    %v840 = vmul.f32 1.0, %v839
    %v841 = vrcp.pop %v838
    %v842 = vmul.f32 1.0, %v841
    %v843 = vtanh.pop %v829
    %v844 = vtanh.pop %v830
    %v847 = vrot.slane %v718, 7
    %v848 = vrot.slane %v719, 7
    %v851 = vmul.f32 %v840, %v847
    %v852 = vmul.f32 %v842, %v848
    %855 = vrot.lane.b32.xlu0 %v843, 64
    %v856 = vpop.permute.xlu0 %855
    %857 = vrot.lane.b32.xlu0 %v844, 64
    %v858 = vpop.permute.xlu0 %857
    %v861 = vmul.f32 %v840, %v856
    %v862 = vmul.f32 %v842, %v858
    %865 = vrot.lane.b32.xlu0 %v861, 32
    %v866 = vpop.permute.xlu0 %865
    %867 = vrot.lane.b32.xlu0 %v862, 32
    %v868 = vpop.permute.xlu0 %867
    %v871 = vadd.f32 %v851, %v866
    %v872 = vadd.f32 %v852, %v868
    %v873 = vtanh.pop %v871
    %v874 = vtanh.pop %v872
    %877 = vrot.lane.b32.xlu0 %v873, 64
    %v878 = vpop.permute.xlu0 %877
    %879 = vrot.lane.b32.xlu0 %v874, 64
    %v880 = vpop.permute.xlu0 %879
    %v883 = vmul.f32 %v840, %v878
    %v884 = vmul.f32 %v842, %v880
    %v887 = vrot.slane %v884, 7
    %vm888 = vcmask 1045509
    %v889 = vsel %vm888, %v887, %v883
    %890 = vrot.lane.b32.xlu0 %v889, 32
    %v891 = vpop.permute.xlu0 %890
    %s893 = scalar_lea.vmem [#allocation7], 8
    %vm894 = vcmask 259076
    %895 = vst.msk [vmem:[%s893 - $0x4] sm:$0x30] %vm894, %v891
    %v896 = vld [vmem:[#allocation4] sm:$0xff]
    %v897 = vld [vmem:[#allocation4 + $0x8] sm:$0xff]
    %v898 = vld [vmem:[#allocation4 + $0x10] sm:$0xff]
    %v899 = vld [vmem:[#allocation4 + $0x18] sm:$0xff]
    %v900 = vrot.slane %v883, 4
    %v901 = vrot.slane %v884, 3
    %v902 = vsel %vm284, %v901, %v900
    %903 = vrot.lane.b32.xlu0 %v902, 32
    %v904 = vpop.permute.xlu0 %903
    %v905 = vsel %vm145, %v904, 0
    %907 = vmatprep.subr.mxu0 0.0
    %908 = vmatpush1.msra.mxu0 %v896
    %909 = vmatprep.subr.mxu0 0.0
    %910 = vmatpush1.msra.mxu0 %v897
    %911 = vmatprep.subr.mxu0 0.0
    %912 = vmatpush1.msra.mxu0 %v898
    %913 = vmatprep.subr.mxu0 0.0
    %914 = vmatpush1.msra.mxu0 %v899
    %915 = vmatprep.subr.mxu0 0.0
    %916 = vmatpush1.msra.mxu0 0.0
    %917 = vmatprep.subr.mxu0 0.0
    %918 = vmatpush1.msra.mxu0 0.0
    %919 = vmatprep.subr.mxu0 0.0
    %920 = vmatpush1.msra.mxu0 0.0
    %921 = vmatprep.subr.mxu0 0.0
    %922 = vmatpush1.msra.mxu0 0.0
    %923 = vmatprep.subr.mxu0 0.0
    %924 = vmatpush1.msra.mxu0 0.0
    %925 = vmatprep.subr.mxu0 0.0
    %926 = vmatpush1.msra.mxu0 0.0
    %927 = vmatprep.subr.mxu0 0.0
    %928 = vmatpush1.msra.mxu0 0.0
    %929 = vmatprep.subr.mxu0 0.0
    %930 = vmatpush1.msra.mxu0 0.0
    %931 = vmatprep.subr.mxu0 0.0
    %932 = vmatpush1.msra.mxu0 0.0
    %933 = vmatprep.subr.mxu0 0.0
    %934 = vmatpush1.msra.mxu0 0.0
    %935 = vmatprep.subr.mxu0 0.0
    %936 = vmatpush1.msra.mxu0 0.0
    %937 = vmatprep.subr.mxu0 0.0
    %938 = vmatpush1.msra.mxu0 0.0
    %939 = vmatprep.subr.mxu0 0.0
    %940 = vmatpush1.msra.mxu0 0.0
    %941 = vmatprep.subr.mxu0 0.0
    %942 = vmatpush1.msra.mxu0 0.0
    %943 = vmatprep.subr.mxu0 0.0
    %944 = vmatpush1.msra.mxu0 0.0
    %945 = vmatprep.subr.mxu0 0.0
    %946 = vmatpush1.msra.mxu0 0.0
    %947 = vmatprep.subr.mxu0 0.0
    %948 = vmatpush1.msra.mxu0 0.0
    %949 = vmatprep.subr.mxu0 0.0
    %950 = vmatpush1.msra.mxu0 0.0
    %951 = vmatprep.subr.mxu0 0.0
    %952 = vmatpush1.msra.mxu0 0.0
    %953 = vmatprep.subr.mxu0 0.0
    %954 = vmatpush1.msra.mxu0 0.0
    %955 = vmatprep.subr.mxu0 0.0
    %956 = vmatpush1.msra.mxu0 0.0
    %957 = vmatprep.subr.mxu0 0.0
    %958 = vmatpush1.msra.mxu0 0.0
    %959 = vmatprep.subr.mxu0 0.0
    %960 = vmatpush1.msra.mxu0 0.0
    %961 = vmatprep.subr.mxu0 0.0
    %962 = vmatpush1.msra.mxu0 0.0
    %963 = vmatprep.subr.mxu0 0.0
    %964 = vmatpush1.msra.mxu0 0.0
    %965 = vmatprep.subr.mxu0 0.0
    %966 = vmatpush1.msra.mxu0 0.0
    %967 = vmatprep.subr.mxu0 0.0
    %968 = vmatpush1.msra.mxu0 0.0
    %969 = vmatprep.subr.mxu0 0.0
    %970 = vmatpush1.msra.mxu0 0.0
    %971 = vmatprep.mubr.f32.mxu0 0.0
    %972 = vmatmul.mubr.f32.gmra.mrb[0].mxu0 %v905
    %v973 = vpop.f32.mrb[0].mxu0
    %v974 = vadd.f32 0.0, %v973
    %v975 = vpop.f32.mrb[0].mxu0
    %976 = vdwg.mxu0
    %v978 = vrot.slane %v974, 3
    %v979 = vrot.slane %v974, 4
    %v982 = vadd.f32 %v131, %v978
    %v983 = vadd.f32 %v136, %v979
    %v984 = vxor.u32 %v982, 2147483648
    %v985 = vxor.u32 %v983, 2147483648
    %v986 = vmul.f32 %v984, 1.442695
    %v987 = vpow.pop %v986
    %v988 = vmul.f32 %v985, 1.442695
    %v989 = vpow.pop %v988
    %v990 = vadd.f32 %v987, 1.0
    %v991 = vadd.f32 %v989, 1.0
    %v992 = vrcp.pop %v990
    %v993 = vmul.f32 1.0, %v992
    %v994 = vrcp.pop %v991
    %v995 = vmul.f32 1.0, %v994
    %v996 = vtanh.pop %v982
    %v997 = vtanh.pop %v983
    %v1000 = vrot.slane %v871, 7
    %v1001 = vrot.slane %v872, 7
    %v1004 = vmul.f32 %v993, %v1000
    %v1005 = vmul.f32 %v995, %v1001
    %1008 = vrot.lane.b32.xlu0 %v996, 64
    %v1009 = vpop.permute.xlu0 %1008
    %1010 = vrot.lane.b32.xlu0 %v997, 64
    %v1011 = vpop.permute.xlu0 %1010
    %v1014 = vmul.f32 %v993, %v1009
    %v1015 = vmul.f32 %v995, %v1011
    %1018 = vrot.lane.b32.xlu0 %v1014, 32
    %v1019 = vpop.permute.xlu0 %1018
    %1020 = vrot.lane.b32.xlu0 %v1015, 32
    %v1021 = vpop.permute.xlu0 %1020
    %v1024 = vadd.f32 %v1004, %v1019
    %v1025 = vadd.f32 %v1005, %v1021
    %v1026 = vtanh.pop %v1024
    %v1027 = vtanh.pop %v1025
    %1030 = vrot.lane.b32.xlu0 %v1026, 64
    %v1031 = vpop.permute.xlu0 %1030
    %1032 = vrot.lane.b32.xlu0 %v1027, 64
    %v1033 = vpop.permute.xlu0 %1032
    %v1036 = vmul.f32 %v993, %v1031
    %v1037 = vmul.f32 %v995, %v1033
    %v1040 = vrot.slane %v1037, 7
    %vm1041 = vcmask 1046534
    %v1042 = vsel %vm1041, %v1040, %v1036
    %1043 = vrot.lane.b32.xlu0 %v1042, 32
    %v1044 = vpop.permute.xlu0 %1043
    %s1046 = scalar_lea.vmem [#allocation7], 10
    %vm1047 = vcmask 260101
    %1048 = vst.msk [vmem:[%s1046 - $0x5] sm:$0x60] %vm1047, %v1044
    %v1049 = vld [vmem:[#allocation4] sm:$0xff]
    %v1050 = vld [vmem:[#allocation4 + $0x8] sm:$0xff]
    %v1051 = vld [vmem:[#allocation4 + $0x10] sm:$0xff]
    %v1052 = vld [vmem:[#allocation4 + $0x18] sm:$0xff]
    %v1053 = vrot.slane %v1036, 5
    %v1054 = vrot.slane %v1037, 4
    %v1055 = vsel %vm284, %v1054, %v1053
    %1056 = vrot.lane.b32.xlu0 %v1055, 32
    %v1057 = vpop.permute.xlu0 %1056
    %v1058 = vsel %vm145, %v1057, 0
    %1060 = vmatprep.subr.mxu0 0.0
    %1061 = vmatpush1.msra.mxu0 %v1049
    %1062 = vmatprep.subr.mxu0 0.0
    %1063 = vmatpush1.msra.mxu0 %v1050
    %1064 = vmatprep.subr.mxu0 0.0
    %1065 = vmatpush1.msra.mxu0 %v1051
    %1066 = vmatprep.subr.mxu0 0.0
    %1067 = vmatpush1.msra.mxu0 %v1052
    %1068 = vmatprep.subr.mxu0 0.0
    %1069 = vmatpush1.msra.mxu0 0.0
    %1070 = vmatprep.subr.mxu0 0.0
    %1071 = vmatpush1.msra.mxu0 0.0
    %1072 = vmatprep.subr.mxu0 0.0
    %1073 = vmatpush1.msra.mxu0 0.0
    %1074 = vmatprep.subr.mxu0 0.0
    %1075 = vmatpush1.msra.mxu0 0.0
    %1076 = vmatprep.subr.mxu0 0.0
    %1077 = vmatpush1.msra.mxu0 0.0
    %1078 = vmatprep.subr.mxu0 0.0
    %1079 = vmatpush1.msra.mxu0 0.0
    %1080 = vmatprep.subr.mxu0 0.0
    %1081 = vmatpush1.msra.mxu0 0.0
    %1082 = vmatprep.subr.mxu0 0.0
    %1083 = vmatpush1.msra.mxu0 0.0
    %1084 = vmatprep.subr.mxu0 0.0
    %1085 = vmatpush1.msra.mxu0 0.0
    %1086 = vmatprep.subr.mxu0 0.0
    %1087 = vmatpush1.msra.mxu0 0.0
    %1088 = vmatprep.subr.mxu0 0.0
    %1089 = vmatpush1.msra.mxu0 0.0
    %1090 = vmatprep.subr.mxu0 0.0
    %1091 = vmatpush1.msra.mxu0 0.0
    %1092 = vmatprep.subr.mxu0 0.0
    %1093 = vmatpush1.msra.mxu0 0.0
    %1094 = vmatprep.subr.mxu0 0.0
    %1095 = vmatpush1.msra.mxu0 0.0
    %1096 = vmatprep.subr.mxu0 0.0
    %1097 = vmatpush1.msra.mxu0 0.0
    %1098 = vmatprep.subr.mxu0 0.0
    %1099 = vmatpush1.msra.mxu0 0.0
    %1100 = vmatprep.subr.mxu0 0.0
    %1101 = vmatpush1.msra.mxu0 0.0
    %1102 = vmatprep.subr.mxu0 0.0
    %1103 = vmatpush1.msra.mxu0 0.0
    %1104 = vmatprep.subr.mxu0 0.0
    %1105 = vmatpush1.msra.mxu0 0.0
    %1106 = vmatprep.subr.mxu0 0.0
    %1107 = vmatpush1.msra.mxu0 0.0
    %1108 = vmatprep.subr.mxu0 0.0
    %1109 = vmatpush1.msra.mxu0 0.0
    %1110 = vmatprep.subr.mxu0 0.0
    %1111 = vmatpush1.msra.mxu0 0.0
    %1112 = vmatprep.subr.mxu0 0.0
    %1113 = vmatpush1.msra.mxu0 0.0
    %1114 = vmatprep.subr.mxu0 0.0
    %1115 = vmatpush1.msra.mxu0 0.0
    %1116 = vmatprep.subr.mxu0 0.0
    %1117 = vmatpush1.msra.mxu0 0.0
    %1118 = vmatprep.subr.mxu0 0.0
    %1119 = vmatpush1.msra.mxu0 0.0
    %1120 = vmatprep.subr.mxu0 0.0
    %1121 = vmatpush1.msra.mxu0 0.0
    %1122 = vmatprep.subr.mxu0 0.0
    %1123 = vmatpush1.msra.mxu0 0.0
    %1124 = vmatprep.mubr.f32.mxu0 0.0
    %1125 = vmatmul.mubr.f32.gmra.mrb[0].mxu0 %v1058
    %v1126 = vpop.f32.mrb[0].mxu0
    %v1127 = vadd.f32 0.0, %v1126
    %v1128 = vpop.f32.mrb[0].mxu0
    %1129 = vdwg.mxu0
    %v1131 = vrot.slane %v1127, 2
    %v1132 = vrot.slane %v1127, 3
    %v1135 = vadd.f32 %v131, %v1131
    %v1136 = vadd.f32 %v136, %v1132
    %v1137 = vxor.u32 %v1135, 2147483648
    %v1138 = vxor.u32 %v1136, 2147483648
    %v1139 = vmul.f32 %v1137, 1.442695
    %v1140 = vpow.pop %v1139
    %v1141 = vmul.f32 %v1138, 1.442695
    %v1142 = vpow.pop %v1141
    %v1143 = vadd.f32 %v1140, 1.0
    %v1144 = vadd.f32 %v1142, 1.0
    %v1145 = vrcp.pop %v1143
    %v1146 = vmul.f32 1.0, %v1145
    %v1147 = vrcp.pop %v1144
    %v1148 = vmul.f32 1.0, %v1147
    %v1149 = vtanh.pop %v1135
    %v1150 = vtanh.pop %v1136
    %v1153 = vrot.slane %v1024, 7
    %v1154 = vrot.slane %v1025, 7
    %v1157 = vmul.f32 %v1146, %v1153
    %v1158 = vmul.f32 %v1148, %v1154
    %1161 = vrot.lane.b32.xlu0 %v1149, 64
    %v1162 = vpop.permute.xlu0 %1161
    %1163 = vrot.lane.b32.xlu0 %v1150, 64
    %v1164 = vpop.permute.xlu0 %1163
    %v1167 = vmul.f32 %v1146, %v1162
    %v1168 = vmul.f32 %v1148, %v1164
    %1171 = vrot.lane.b32.xlu0 %v1167, 32
    %v1172 = vpop.permute.xlu0 %1171
    %1173 = vrot.lane.b32.xlu0 %v1168, 32
    %v1174 = vpop.permute.xlu0 %1173
    %v1177 = vadd.f32 %v1157, %v1172
    %v1178 = vadd.f32 %v1158, %v1174
    %v1179 = vtanh.pop %v1177
    %v1180 = vtanh.pop %v1178
    %1183 = vrot.lane.b32.xlu0 %v1179, 64
    %v1184 = vpop.permute.xlu0 %1183
    %1185 = vrot.lane.b32.xlu0 %v1180, 64
    %v1186 = vpop.permute.xlu0 %1185
    %v1189 = vmul.f32 %v1146, %v1184
    %v1190 = vmul.f32 %v1148, %v1186
    %v1193 = vrot.slane %v1190, 7
    %vm1194 = vcmask 1047559
    %v1195 = vsel %vm1194, %v1193, %v1189
    %1196 = vrot.lane.b32.xlu0 %v1195, 32
    %v1197 = vpop.permute.xlu0 %1196
    %s1199 = scalar_lea.vmem [#allocation7], 12
    %vm1200 = vcmask 261126
    %1201 = vst.msk [vmem:[%s1199 - $0x6] sm:$0xc0] %vm1200, %v1197
    %v1202 = vld [vmem:[#allocation4] sm:$0xff]
    %v1203 = vld [vmem:[#allocation4 + $0x8] sm:$0xff]
    %v1204 = vld [vmem:[#allocation4 + $0x10] sm:$0xff]
    %v1205 = vld [vmem:[#allocation4 + $0x18] sm:$0xff]
    %v1206 = vrot.slane %v1189, 6
    %v1207 = vrot.slane %v1190, 5
    %v1208 = vsel %vm284, %v1207, %v1206
    %1209 = vrot.lane.b32.xlu0 %v1208, 32
    %v1210 = vpop.permute.xlu0 %1209
    %v1211 = vsel %vm145, %v1210, 0
    %1213 = vmatprep.subr.mxu0 0.0
    %1214 = vmatpush1.msra.mxu0 %v1202
    %1215 = vmatprep.subr.mxu0 0.0
    %1216 = vmatpush1.msra.mxu0 %v1203
    %1217 = vmatprep.subr.mxu0 0.0
    %1218 = vmatpush1.msra.mxu0 %v1204
    %1219 = vmatprep.subr.mxu0 0.0
    %1220 = vmatpush1.msra.mxu0 %v1205
    %1221 = vmatprep.subr.mxu0 0.0
    %1222 = vmatpush1.msra.mxu0 0.0
    %1223 = vmatprep.subr.mxu0 0.0
    %1224 = vmatpush1.msra.mxu0 0.0
    %1225 = vmatprep.subr.mxu0 0.0
    %1226 = vmatpush1.msra.mxu0 0.0
    %1227 = vmatprep.subr.mxu0 0.0
    %1228 = vmatpush1.msra.mxu0 0.0
    %1229 = vmatprep.subr.mxu0 0.0
    %1230 = vmatpush1.msra.mxu0 0.0
    %1231 = vmatprep.subr.mxu0 0.0
    %1232 = vmatpush1.msra.mxu0 0.0
    %1233 = vmatprep.subr.mxu0 0.0
    %1234 = vmatpush1.msra.mxu0 0.0
    %1235 = vmatprep.subr.mxu0 0.0
    %1236 = vmatpush1.msra.mxu0 0.0
    %1237 = vmatprep.subr.mxu0 0.0
    %1238 = vmatpush1.msra.mxu0 0.0
    %1239 = vmatprep.subr.mxu0 0.0
    %1240 = vmatpush1.msra.mxu0 0.0
    %1241 = vmatprep.subr.mxu0 0.0
    %1242 = vmatpush1.msra.mxu0 0.0
    %1243 = vmatprep.subr.mxu0 0.0
    %1244 = vmatpush1.msra.mxu0 0.0
    %1245 = vmatprep.subr.mxu0 0.0
    %1246 = vmatpush1.msra.mxu0 0.0
    %1247 = vmatprep.subr.mxu0 0.0
    %1248 = vmatpush1.msra.mxu0 0.0
    %1249 = vmatprep.subr.mxu0 0.0
    %1250 = vmatpush1.msra.mxu0 0.0
    %1251 = vmatprep.subr.mxu0 0.0
    %1252 = vmatpush1.msra.mxu0 0.0
    %1253 = vmatprep.subr.mxu0 0.0
    %1254 = vmatpush1.msra.mxu0 0.0
    %1255 = vmatprep.subr.mxu0 0.0
    %1256 = vmatpush1.msra.mxu0 0.0
    %1257 = vmatprep.subr.mxu0 0.0
    %1258 = vmatpush1.msra.mxu0 0.0
    %1259 = vmatprep.subr.mxu0 0.0
    %1260 = vmatpush1.msra.mxu0 0.0
    %1261 = vmatprep.subr.mxu0 0.0
    %1262 = vmatpush1.msra.mxu0 0.0
    %1263 = vmatprep.subr.mxu0 0.0
    %1264 = vmatpush1.msra.mxu0 0.0
    %1265 = vmatprep.subr.mxu0 0.0
    %1266 = vmatpush1.msra.mxu0 0.0
    %1267 = vmatprep.subr.mxu0 0.0
    %1268 = vmatpush1.msra.mxu0 0.0
    %1269 = vmatprep.subr.mxu0 0.0
    %1270 = vmatpush1.msra.mxu0 0.0
    %1271 = vmatprep.subr.mxu0 0.0
    %1272 = vmatpush1.msra.mxu0 0.0
    %1273 = vmatprep.subr.mxu0 0.0
    %1274 = vmatpush1.msra.mxu0 0.0
    %1275 = vmatprep.subr.mxu0 0.0
    %1276 = vmatpush1.msra.mxu0 0.0
    %1277 = vmatprep.mubr.f32.mxu0 0.0
    %1278 = vmatmul.mubr.f32.gmra.mrb[0].mxu0 %v1211
    %v1279 = vpop.f32.mrb[0].mxu0
    %v1280 = vadd.f32 0.0, %v1279
    %v1281 = vpop.f32.mrb[0].mxu0
    %1282 = vdwg.mxu0
    %v1284 = vrot.slane %v1280, 1
    %v1285 = vrot.slane %v1280, 2
    %v1288 = vadd.f32 %v131, %v1284
    %v1289 = vadd.f32 %v136, %v1285
    %v1290 = vxor.u32 %v1288, 2147483648
    %v1291 = vxor.u32 %v1289, 2147483648
    %v1292 = vmul.f32 %v1290, 1.442695
    %v1293 = vpow.pop %v1292
    %v1294 = vmul.f32 %v1291, 1.442695
    %v1295 = vpow.pop %v1294
    %v1296 = vadd.f32 %v1293, 1.0
    %v1297 = vadd.f32 %v1295, 1.0
    %v1298 = vrcp.pop %v1296
    %v1299 = vmul.f32 1.0, %v1298
    %v1300 = vrcp.pop %v1297
    %v1301 = vmul.f32 1.0, %v1300
    %v1302 = vtanh.pop %v1288
    %v1303 = vtanh.pop %v1289
    %v1306 = vrot.slane %v1177, 7
    %v1307 = vrot.slane %v1178, 7
    %v1310 = vmul.f32 %v1299, %v1306
    %v1311 = vmul.f32 %v1301, %v1307
    %1314 = vrot.lane.b32.xlu0 %v1302, 64
    %v1315 = vpop.permute.xlu0 %1314
    %1316 = vrot.lane.b32.xlu0 %v1303, 64
    %v1317 = vpop.permute.xlu0 %1316
    %v1320 = vmul.f32 %v1299, %v1315
    %v1321 = vmul.f32 %v1301, %v1317
    %1324 = vrot.lane.b32.xlu0 %v1320, 32
    %v1325 = vpop.permute.xlu0 %1324
    %1326 = vrot.lane.b32.xlu0 %v1321, 32
    %v1327 = vpop.permute.xlu0 %1326
    %v1330 = vadd.f32 %v1310, %v1325
    %v1331 = vadd.f32 %v1311, %v1327
    %v1332 = vtanh.pop %v1330
    %v1333 = vtanh.pop %v1331
    %1336 = vrot.lane.b32.xlu0 %v1332, 64
    %v1337 = vpop.permute.xlu0 %1336
    %1338 = vrot.lane.b32.xlu0 %v1333, 64
    %v1339 = vpop.permute.xlu0 %1338
    %v1342 = vmul.f32 %v1299, %v1337
    %v1343 = vmul.f32 %v1301, %v1339
    %v1346 = vrot.slane %v1343, 7
    %1347 = vrot.lane.b32.xlu0 %v1342, 32
    %v1348 = vpop.permute.xlu0 %1347
    %1349 = vrot.lane.b32.xlu0 %v1346, 32
    %v1350 = vpop.permute.xlu0 %1349
    %s1353 = scalar_lea.vmem [#allocation7], 14
    %vm1354 = vcmask 261127
    %1355 = vst.msk [vmem:[%s1353 - $0x7] sm:$0x80] %vm1354, %v1348
    %vm1356 = vcmask 253952
    %1357 = vst.msk [vmem:[%s1353 + $0x1] sm:$0x1] %vm1356, %v1350
    %1358 = vst.msk [vmem:[#allocation2 - $0x7] sm:$0x80] %vm1354, %v1348
    %1359 = vst.msk [vmem:[#allocation2 + $0x1] sm:$0x1] %vm1356, %v1350
    %v1362 = vrot.slane %v1331, 7
    %1363 = vrot.lane.b32.xlu0 %v1330, 96
    %v1364 = vpop.permute.xlu0 %1363
    %1365 = vrot.lane.b32.xlu0 %v1362, 96
    %v1366 = vpop.permute.xlu0 %1365
    %1369 = vst.msk [vmem:[#allocation3 - $0x7] sm:$0x80] %vm1354, %v1364
    %1370 = vst.msk [vmem:[#allocation3 + $0x1] sm:$0x1] %vm1356, %v1366
    %1371 = vst.msk [vmem:[#allocation8 - $0x7] sm:$0x80] %vm1354, %v1348
    %1372 = vst.msk [vmem:[#allocation8 + $0x1] sm:$0x1] %vm1356, %v1350
    %1373 = vst.msk [vmem:[#allocation10 - $0x7] sm:$0x80] %vm1354, %v1364
    %1374 = vst.msk [vmem:[#allocation10 + $0x1] sm:$0x1] %vm1356, %v1366
    // Predicated region
    $region26: #{tpu_custom_call.1} parent=1 // pred_check
      _
    $region27: #{tpu_custom_call.1} parent=1 // pred_check_branch
      %1376 = sbr.rel (0) target = $region29
    $region28: #{tpu_custom_call.1} parent=1 // pred_region
      %s1378 = ssub.s32 256, 256
      %1379 = vsyncadd [#allocation6], %s1378
      %s1380 = sshll.u32 [#allocation7], 4
      %s1381 = int_to_ptr.vmem [resolvable:$true] %s1380
      %1386 = dma.vmem_to_hbm [thread:$0]  %s1381, 256, %s4, [#allocation6], 32, 32, 2
    $region29: #{tpu_custom_call.1} parent=1 // pred_fallthru
      _
    // Predicated region
    $region30: #{tpu_custom_call.1} parent=1 // pred_check
      _
    $region31: #{tpu_custom_call.1} parent=1 // pred_check_branch
      %1388 = sbr.rel (0) target = $region33
    $region32: #{tpu_custom_call.1} parent=1 // pred_region
      %s1390 = ssub.s32 32, 32
      %1391 = vsyncadd [#allocation9], %s1390
      %s1393 = sshll.u32 [#allocation8], 4
      %s1394 = int_to_ptr.vmem [resolvable:$true] %s1393
      %1396 = dma.vmem_to_hbm [thread:$0]  %s1394, 32, %s5, [#allocation9]
    $region33: #{tpu_custom_call.1} parent=1 // pred_fallthru
      _
    // Predicated region
    $region34: #{tpu_custom_call.1} parent=1 // pred_check
      _
    $region35: #{tpu_custom_call.1} parent=1 // pred_check_branch
      %1398 = sbr.rel (0) target = $region37
    $region36: #{tpu_custom_call.1} parent=1 // pred_region
      %s1400 = ssub.s32 32, 32
      %1401 = vsyncadd [#allocation9], %s1400
      %s1403 = sshll.u32 [#allocation10], 4
      %s1404 = int_to_ptr.vmem [resolvable:$true] %s1403
      %1406 = dma.vmem_to_hbm [thread:$0]  %s1404, 32, %s6, [#allocation9]
    $region37: #{tpu_custom_call.1} parent=1 // pred_fallthru
      _
    // Predicated region
    $region38: #{tpu_custom_call.1} parent=1 // pred_check
      _
    $region39: #{tpu_custom_call.1} parent=1 // pred_check_branch
      %1408 = sbr.rel (0) target = $region41
    $region40: #{tpu_custom_call.1} parent=1 // pred_region
      %1409 = dma.done [#allocation6], 256
    $region41: #{tpu_custom_call.1} parent=1 // pred_fallthru
      _
    // Predicated region
    $region42: #{tpu_custom_call.1} parent=1 // pred_check
      _
    $region43: #{tpu_custom_call.1} parent=1 // pred_check_branch
      %1411 = sbr.rel (0) target = $region45
    $region44: #{tpu_custom_call.1} parent=1 // pred_region
      %1412 = dma.done [#allocation9], 32
    $region45: #{tpu_custom_call.1} parent=1 // pred_fallthru
      _
    // Predicated region
    $region46: #{tpu_custom_call.1} parent=1 // pred_check
      _
    $region47: #{tpu_custom_call.1} parent=1 // pred_check_branch
      %1414 = sbr.rel (0) target = $region49
    $region48: #{tpu_custom_call.1} parent=1 // pred_region
      %1415 = dma.done [#allocation9], 32
    $region49: #{tpu_custom_call.1} parent=1 // pred_fallthru
      _
    %1416 = vsyncpa [#allocation5], 1
    %1417 = vsyncpa [#allocation6], 1
    %1418 = vsyncpa [#allocation9], 1

</llo_original>
